<compile_context>
chip_gen: v7x
topology: tpu7x:2x2x1
jax: 0.10.0
libtpu: 0.0.40
codegen_flags: <defaults>
</compile_context>

<pallas_src>
import math
import functools

import jax
import jax.numpy as jnp
from jax.experimental import pallas as pl
from jax.experimental.pallas import tpu as pltpu


# ----------------------------- kernel helpers ------------------------------

def _layernorm(x, gamma, beta, eps=1e-5):
    # x: (rows, C) f32, gamma/beta: (1, C) f32
    mean = jnp.mean(x, axis=-1, keepdims=True)
    var = jnp.mean((x - mean) ** 2, axis=-1, keepdims=True)
    return (x - mean) * jax.lax.rsqrt(var + eps) * gamma + beta


def _gelu_tanh(x):
    # GELU(approximate='tanh'), matches torch.nn.GELU(approximate='tanh')
    c = math.sqrt(2.0 / math.pi)
    return 0.5 * x * (1.0 + jnp.tanh(c * (x + 0.044715 * x * x * x)))


# ------------------------------ Pallas kernel ------------------------------

def block_kernel(x_ref,
                 ln1_g_ref, ln1_b_ref,
                 w_qkv_ref, b_qkv_ref,
                 w_o_ref, b_o_ref,
                 ln2_g_ref, ln2_b_ref,
                 w_fc_ref, b_fc_ref,
                 w_mp_ref, b_mp_ref,
                 o_ref,
                 k_scr, v_scr,
                 *, n_head, q_tile):
    qt = pl.program_id(1)                     # query-tile index (grid axis 1, sequential)
    tq = q_tile
    x_t = x_ref[0]                            # (tq, C) f32 for this (batch, q-tile)
    C = x_t.shape[-1]
    hd = C // n_head
    r0 = pl.multiple_of(qt * tq, tq)

    # ---- ln_1 + fused QKV projection for this tile (one full-width MXU matmul) ----
    h1 = _layernorm(x_t, ln1_g_ref[...], ln1_b_ref[...]).astype(jnp.bfloat16)
    qkv = jnp.dot(h1, w_qkv_ref[...],
                  preferred_element_type=jnp.float32) + b_qkv_ref[...]      # (tq, 3C)
    q_b = qkv[:, :C].astype(jnp.bfloat16)     # pre-scaled by 1/sqrt(hd) (wrapper fold)
    # append this tile's K/V rows to the per-batch KV cache (persistent VMEM scratch)
    k_scr[pl.ds(r0, tq), :] = qkv[:, C:2 * C].astype(jnp.bfloat16)
    v_scr[pl.ds(r0, tq), :] = qkv[:, 2 * C:3 * C].astype(jnp.bfloat16)

    # static per-head q slices (value slices, hoisted out of the kv loop)
    q_heads = [q_b[:, h * hd:(h + 1) * hd] for h in range(n_head)]

    # intra-tile causal bias; only applied on the diagonal kv tile. Finite sentinel.
    rows = jax.lax.broadcasted_iota(jnp.int32, (tq, tq), 0)
    cols = jax.lax.broadcasted_iota(jnp.int32, (tq, tq), 1)
    diag_bias = jnp.where(rows >= cols, 0.0, -1e30).astype(jnp.float32)
    zero_bias = jnp.zeros_like(diag_bias)

    # ---- flash-style loop over the causally-visible kv tiles only (kt = 0..qt) ----
    def kv_step(kt, carry):
        ms, ls, accs = carry
        c0 = pl.multiple_of(kt * tq, tq)
        k_rows = k_scr[pl.ds(c0, tq), :]                      # (tq, C) bf16, lane-dense
        v_rows = v_scr[pl.ds(c0, tq), :]
        bias = jnp.where(kt == qt, diag_bias, zero_bias)
        new_ms, new_ls, new_accs = [], [], []
        for h in range(n_head):
            k_t = k_rows[:, h * hd:(h + 1) * hd]              # (tq, hd)
            v_t = v_rows[:, h * hd:(h + 1) * hd]
            s = jax.lax.dot_general(q_heads[h], k_t, (((1,), (1,)), ((), ())),
                                    preferred_element_type=jnp.float32)   # (tq, tq)
            s = s + bias
            m_new = jnp.maximum(ms[h], jnp.max(s, axis=-1, keepdims=True))
            alpha = jnp.exp(ms[h] - m_new)
            p = jnp.exp(s - m_new)
            l_new = alpha * ls[h] + jnp.sum(p, axis=-1, keepdims=True)
            a_new = alpha * accs[h] + jnp.dot(p.astype(jnp.bfloat16), v_t,
                                              preferred_element_type=jnp.float32)
            new_ms.append(m_new); new_ls.append(l_new); new_accs.append(a_new)
        return tuple(new_ms), tuple(new_ls), tuple(new_accs)

    init = (tuple(jnp.full((tq, 1), -1e30, jnp.float32) for _ in range(n_head)),
            tuple(jnp.zeros((tq, 1), jnp.float32) for _ in range(n_head)),
            tuple(jnp.zeros((tq, hd), jnp.float32) for _ in range(n_head)))
    ms, ls, accs = jax.lax.fori_loop(0, qt + 1, kv_step, init)

    # normalize AFTER the PV matmul: per-row multiply on (tq, hd), not (tq, kv)
    ys = [(accs[h] * pl.reciprocal(ls[h], approx=True)).astype(jnp.bfloat16)
          for h in range(n_head)]
    y = jnp.concatenate(ys, axis=-1)                          # (tq, C) bf16

    # single head-concatenated output projection (K = C contraction)
    attn = jnp.dot(y, w_o_ref[...], preferred_element_type=jnp.float32) + b_o_ref[...]
    x1 = x_t + attn                                           # attention residual (f32)

    # ---- ln_2 + MLP + final residual, fused into the lane-dense output tile ----
    h2 = _layernorm(x1, ln2_g_ref[...], ln2_b_ref[...]).astype(jnp.bfloat16)
    f = jnp.dot(h2, w_fc_ref[...], preferred_element_type=jnp.float32) + b_fc_ref[...]
    f = _gelu_tanh(f)
    mlp = jnp.dot(f.astype(jnp.bfloat16), w_mp_ref[...],
                  preferred_element_type=jnp.float32) + b_mp_ref[...]

    o_ref[0] = (x1 + mlp).astype(o_ref.dtype)


# ------------------------------- wrapper -----------------------------------

def _vmem_capacity_bytes():
    try:
        return int(pltpu.get_tpu_info().vmem_capacity_bytes)
    except Exception:
        return 64 * 2 ** 20          # conservative fallback (v7x-sized)


def _pick_q_tile(T, max_tile):
    """Largest divisor of T <= max_tile that is a multiple of 128 (else 8, else T)."""
    if T <= max_tile:
        return T
    for cand in range(max_tile, 127, -1):
        if T % cand == 0 and cand % 128 == 0:
            return cand
    for cand in range(max_tile, 7, -1):
        if T % cand == 0 and cand % 8 == 0:
            return cand
    return T


def _prepare_params(params, n_head, compute_dtype=jnp.bfloat16):
    """PyTorch-style Block params -> fused bf16 kernel params (scale folded into Q)."""
    (ln1_g, ln1_b, w_attn, b_attn, w_aproj, b_aproj,
     ln2_g, ln2_b, w_fc, b_fc, w_mproj, b_mproj) = params
    C = w_attn.shape[0]
    hd = C // n_head
    scale = 1.0 / math.sqrt(hd)
    f32 = jnp.float32

    # fold 1/sqrt(hd) into the Q third of the fused QKV projection (zero kernel cost)
    w_qkv = jnp.concatenate([w_attn[:, :C] * scale, w_attn[:, C:]], axis=1)
    b_qkv = jnp.concatenate([b_attn[:, :C] * scale, b_attn[:, C:]], axis=1)

    return [
        ln1_g.astype(f32), ln1_b.astype(f32),
        w_qkv.astype(compute_dtype), b_qkv.astype(f32),
        w_aproj.astype(compute_dtype), b_aproj.astype(f32),
        ln2_g.astype(f32), ln2_b.astype(f32),
        w_fc.astype(compute_dtype), b_fc.astype(f32),
        w_mproj.astype(compute_dtype), b_mproj.astype(f32),
    ]


def gpt2_block(x, params, n_head):
    """x: (B, T, C) float32; params: 12 arrays in the PyTorch Block order
    (ln1_g, ln1_b, w_attn[C,3C], b_attn[1,3C], w_aproj[C,C], b_aproj[1,C],
     ln2_g, ln2_b, w_fc[C,4C], b_fc[1,4C], w_mproj[4C,C], b_mproj[1,C])."""
    B, T, C = x.shape
    assert C % n_head == 0

    vmem_cap = _vmem_capacity_bytes()
    max_tile = 512 if vmem_cap >= (96 << 20) else 256      # bigger tiles on 128 MiB chips
    q_tile = _pick_q_tile(T, max_tile)
    assert T % q_tile == 0
    n_q_tiles = T // q_tile

    kparams = _prepare_params(params, n_head)

    def _const_spec(a):
        # full weight resident in VMEM; constant block index => no per-step re-DMA
        return pl.BlockSpec(a.shape, lambda b, qt, n=a.ndim: (0,) * n)

    in_specs = [pl.BlockSpec((1, q_tile, C), lambda b, qt: (b, qt, 0))] + \
               [_const_spec(p) for p in kparams]
    out_spec = pl.BlockSpec((1, q_tile, C), lambda b, qt: (b, qt, 0))

    # ---- advisory cost estimate (projections/MLP + causal attention) ----
    weight_bytes = int(sum(int(p.size) * p.dtype.itemsize for p in kparams))
    matmul_flops = 2 * B * T * C * (12 * C) + 2 * B * T * T * C
    transcendentals = B * n_head * T * T // 2 + B * T * 4 * C
    bytes_accessed = int(2 * B * T * C * 4 + weight_bytes)
    cost = pl.CostEstimate(flops=int(matmul_flops),
                           transcendentals=int(transcendentals),
                           bytes_accessed=bytes_accessed)

    # ---- generation-aware VMEM budget (64 MiB on v7x, 128 MiB on v5e/v6e) ----
    est = (2 * weight_bytes                    # weights (pipeline double-buffer)
           + 2 * 2 * q_tile * C * 4            # x / out tiles, double-buffered
           + 2 * T * C * 2                     # bf16 K/V cache scratch
           + 8 * q_tile * q_tile * 4           # score / prob temporaries
           + 3 * q_tile * 4 * C * 4)           # MLP hidden temporaries
    vmem_limit = int(min(int(0.75 * vmem_cap), max(32 * 2 ** 20, int(1.5 * est))))

    return pl.pallas_call(
        functools.partial(block_kernel, n_head=n_head, q_tile=q_tile),
        out_shape=jax.ShapeDtypeStruct((B, T, C), x.dtype),
        grid_spec=pltpu.PrefetchScalarGridSpec(
            num_scalar_prefetch=0,
            grid=(B, n_q_tiles),
            in_specs=in_specs,
            out_specs=out_spec,
            scratch_shapes=[pltpu.VMEM((T, C), jnp.bfloat16),   # K cache
                            pltpu.VMEM((T, C), jnp.bfloat16)],  # V cache
        ),
        compiler_params=pltpu.CompilerParams(
            dimension_semantics=("parallel", "arbitrary"),
            vmem_limit_bytes=vmem_limit,
        ),
        cost_estimate=cost,
    )(x, *kparams)


# ----------------------------- pure-JAX reference --------------------------

def ref_block(x, params, n_head):
    (ln1_g, ln1_b, w_attn, b_attn, w_aproj, b_aproj,
     ln2_g, ln2_b, w_fc, b_fc, w_mproj, b_mproj) = params
    B, T, C = x.shape
    hd = C // n_head

    def ln(z, g, b):
        m = jnp.mean(z, axis=-1, keepdims=True)
        v = jnp.mean((z - m) ** 2, axis=-1, keepdims=True)
        return (z - m) / jnp.sqrt(v + 1e-5) * g + b

    h = ln(x, ln1_g, ln1_b)
    qkv = h @ w_attn + b_attn
    q, k, v = jnp.split(qkv, 3, axis=-1)
    q = q.reshape(B, T, n_head, hd).transpose(0, 2, 1, 3)
    k = k.reshape(B, T, n_head, hd).transpose(0, 2, 1, 3)
    v = v.reshape(B, T, n_head, hd).transpose(0, 2, 1, 3)
    s = jnp.einsum('bhqd,bhkd->bhqk', q, k) / math.sqrt(hd)
    mask = jnp.tril(jnp.ones((T, T), dtype=bool))
    s = jnp.where(mask, s, -jnp.inf)
    p = jax.nn.softmax(s, axis=-1)
    y = jnp.einsum('bhqk,bhkd->bhqd', p, v).transpose(0, 2, 1, 3).reshape(B, T, C)
    y = y @ w_aproj + b_aproj
    x = x + y

    h = ln(x, ln2_g, ln2_b)
    h = h @ w_fc + b_fc
    c = math.sqrt(2.0 / math.pi)
    h = 0.5 * h * (1.0 + jnp.tanh(c * (h + 0.044715 * h ** 3)))
    h = h @ w_mproj + b_mproj
    return x + h


# --------------------------------- main -------------------------------------

def _make_params(key, C):
    ks = jax.random.split(key, 8)
    f32 = jnp.float32
    ln1_g = 1.0 + 0.1 * jax.random.normal(ks[0], (1, C), f32)
    ln1_b = 0.1 * jax.random.normal(ks[1], (1, C), f32)
    w_attn = 0.02 * jax.random.normal(ks[2], (C, 3 * C), f32)
    b_attn = 0.02 * jax.random.normal(ks[3], (1, 3 * C), f32)
    w_aproj = 0.02 * jax.random.normal(ks[4], (C, C), f32)
    b_aproj = 0.02 * jax.random.normal(ks[5], (1, C), f32)
    ln2_g = 1.0 + 0.1 * jax.random.normal(ks[6], (1, C), f32)
    ln2_b = 0.1 * jax.random.normal(ks[7], (1, C), f32)
    kf = jax.random.split(ks[0], 4)
    w_fc = 0.02 * jax.random.normal(kf[1], (C, 4 * C), f32)
    b_fc = 0.02 * jax.random.normal(kf[2], (1, 4 * C), f32)
    w_mproj = 0.02 * jax.random.normal(kf[3], (4 * C, C), f32)
    b_mproj = 0.02 * jax.random.normal(kf[0], (1, C), f32)
    return [ln1_g, ln1_b, w_attn, b_attn, w_aproj, b_aproj,
            ln2_g, ln2_b, w_fc, b_fc, w_mproj, b_mproj]


def _run_check(B, T, C, n_head, key, atol):
    kx, kp = jax.random.split(key)
    x = jax.random.normal(kx, (B, T, C), dtype=jnp.float32)
    params = _make_params(kp, C)
    out = jax.block_until_ready(gpt2_block(x, params, n_head))
    ref = ref_block(x, params, n_head)
    assert out.shape == (B, T, C)
    # bf16 MXU operands + approx reciprocal => loosened tolerance vs. f32 reference
    assert jnp.allclose(out, ref, atol=atol, rtol=atol), (
        f"mismatch vs reference (max abs err {float(jnp.max(jnp.abs(out - ref)))})")


if __name__ == "__main__":
    # small correctness check (shapes consistent with the module: B=2, T=8, C=32)
    _run_check(B=2, T=8, C=32, n_head=4, key=jax.random.PRNGKey(0), atol=2e-2)
    # production-tiling sanity check: multi q-tile grid, 128-multiple tiles,
    # hd=64 head slices, dynamic causal kv loop (kept cheap: C=256, B=1)
    _run_check(B=1, T=1024, C=256, n_head=4, key=jax.random.PRNGKey(1), atol=2e-2)
    print("KERNEL_OK")
</pallas_src>

<mosaic_0001>
module attributes {stable_mosaic.version = 11 : i64} {
  func.func @block_kernel(%arg0: i32, %arg1: i32, %arg2: memref<1x8x32xf32, #tpu.memory_space<vmem>>, %arg3: memref<1x32xf32, #tpu.memory_space<vmem>>, %arg4: memref<1x32xf32, #tpu.memory_space<vmem>>, %arg5: memref<32x96xbf16, #tpu.memory_space<vmem>>, %arg6: memref<1x96xf32, #tpu.memory_space<vmem>>, %arg7: memref<32x32xbf16, #tpu.memory_space<vmem>>, %arg8: memref<1x32xf32, #tpu.memory_space<vmem>>, %arg9: memref<1x32xf32, #tpu.memory_space<vmem>>, %arg10: memref<1x32xf32, #tpu.memory_space<vmem>>, %arg11: memref<32x128xbf16, #tpu.memory_space<vmem>>, %arg12: memref<1x128xf32, #tpu.memory_space<vmem>>, %arg13: memref<128x32xbf16, #tpu.memory_space<vmem>>, %arg14: memref<1x32xf32, #tpu.memory_space<vmem>>, %arg15: memref<1x8x32xf32, #tpu.memory_space<vmem>>, %arg16: memref<8x32xbf16, #tpu.memory_space<vmem>>, %arg17: memref<8x32xbf16, #tpu.memory_space<vmem>>) attributes {dimension_semantics = [#tpu.dimension_semantics<parallel>, #tpu.dimension_semantics<arbitrary>], iteration_bounds = array<i64: 2, 1>, scalar_prefetch = 0 : i64, scratch_operands = 2 : i64, tpu.core_type = #tpu.core_type<tc>, window_params = [{transform_indices = @transform_0, window_bounds = array<i64: 1, 8, 32>}, {pipeline_mode = #tpu.pipeline_mode<synchronous>, transform_indices = @transform_1, window_bounds = array<i64: 1, 32>}, {pipeline_mode = #tpu.pipeline_mode<synchronous>, transform_indices = @transform_2, window_bounds = array<i64: 1, 32>}, {pipeline_mode = #tpu.pipeline_mode<synchronous>, transform_indices = @transform_3, window_bounds = array<i64: 32, 96>}, {pipeline_mode = #tpu.pipeline_mode<synchronous>, transform_indices = @transform_4, window_bounds = array<i64: 1, 96>}, {pipeline_mode = #tpu.pipeline_mode<synchronous>, transform_indices = @transform_5, window_bounds = array<i64: 32, 32>}, {pipeline_mode = #tpu.pipeline_mode<synchronous>, transform_indices = @transform_6, window_bounds = array<i64: 1, 32>}, {pipeline_mode = #tpu.pipeline_mode<synchronous>, transform_indices = @transform_7, window_bounds = array<i64: 1, 32>}, {pipeline_mode = #tpu.pipeline_mode<synchronous>, transform_indices = @transform_8, window_bounds = array<i64: 1, 32>}, {pipeline_mode = #tpu.pipeline_mode<synchronous>, transform_indices = @transform_9, window_bounds = array<i64: 32, 128>}, {pipeline_mode = #tpu.pipeline_mode<synchronous>, transform_indices = @transform_10, window_bounds = array<i64: 1, 128>}, {pipeline_mode = #tpu.pipeline_mode<synchronous>, transform_indices = @transform_11, window_bounds = array<i64: 128, 32>}, {pipeline_mode = #tpu.pipeline_mode<synchronous>, transform_indices = @transform_12, window_bounds = array<i64: 1, 32>}, {transform_indices = @transform_13, window_bounds = array<i64: 1, 8, 32>}]} {
    %c0 = arith.constant 0 : index
    %c0_0 = arith.constant 0 : index
    %c0_1 = arith.constant 0 : index
    %0 = vector.load %arg2[%c0, %c0_0, %c0_1] : memref<1x8x32xf32, #tpu.memory_space<vmem>>, vector<1x8x32xf32>
    %1 = vector.shape_cast %0 : vector<1x8x32xf32> to vector<8x32xf32>
    %c8_i32 = arith.constant 8 : i32
    %2 = arith.muli %arg1, %c8_i32 : i32
    %3 = tpu.assume_multiple %2, 8 : i32
    %c0_2 = arith.constant 0 : index
    %c0_3 = arith.constant 0 : index
    %4 = vector.load %arg3[%c0_2, %c0_3] : memref<1x32xf32, #tpu.memory_space<vmem>>, vector<1x32xf32>
    %c0_4 = arith.constant 0 : index
    %c0_5 = arith.constant 0 : index
    %5 = vector.load %arg4[%c0_4, %c0_5] : memref<1x32xf32, #tpu.memory_space<vmem>>, vector<1x32xf32>
    %cst = arith.constant dense<0.000000e+00> : vector<8xf32>
    %6 = vector.multi_reduction <add>, %1, %cst [1] : vector<8x32xf32> to vector<8xf32>
    %7 = vector.shape_cast %6 : vector<8xf32> to vector<8x1xf32>
    %cst_6 = arith.constant 3.200000e+01 : f32
    %8 = vector.broadcast %cst_6 : f32 to vector<8x1xf32>
    %9 = arith.divf %7, %8 : vector<8x1xf32>
    %10 = vector.broadcast %9 : vector<8x1xf32> to vector<8x32xf32>
    %11 = arith.subf %1, %10 : vector<8x32xf32>
    %12 = arith.mulf %11, %11 : vector<8x32xf32>
    %cst_7 = arith.constant dense<0.000000e+00> : vector<8xf32>
    %13 = vector.multi_reduction <add>, %12, %cst_7 [1] : vector<8x32xf32> to vector<8xf32>
    %14 = vector.shape_cast %13 : vector<8xf32> to vector<8x1xf32>
    %cst_8 = arith.constant 3.200000e+01 : f32
    %15 = vector.broadcast %cst_8 : f32 to vector<8x1xf32>
    %16 = arith.divf %14, %15 : vector<8x1xf32>
    %17 = vector.broadcast %9 : vector<8x1xf32> to vector<8x32xf32>
    %18 = arith.subf %1, %17 : vector<8x32xf32>
    %cst_9 = arith.constant 9.99999974E-6 : f32
    %19 = vector.broadcast %cst_9 : f32 to vector<8x1xf32>
    %20 = arith.addf %16, %19 : vector<8x1xf32>
    %21 = math.rsqrt %20 : vector<8x1xf32>
    %22 = vector.broadcast %21 : vector<8x1xf32> to vector<8x32xf32>
    %23 = arith.mulf %18, %22 : vector<8x32xf32>
    %24 = vector.broadcast %4 : vector<1x32xf32> to vector<8x32xf32>
    %25 = arith.mulf %23, %24 : vector<8x32xf32>
    %26 = vector.broadcast %5 : vector<1x32xf32> to vector<8x32xf32>
    %27 = arith.addf %25, %26 : vector<8x32xf32>
    %28 = arith.truncf %27 : vector<8x32xf32> to vector<8x32xbf16>
    %c0_10 = arith.constant 0 : index
    %c0_11 = arith.constant 0 : index
    %29 = vector.load %arg5[%c0_10, %c0_11] : memref<32x96xbf16, #tpu.memory_space<vmem>>, vector<32x96xbf16>
    %cst_12 = arith.constant dense<0.000000e+00> : vector<8x96xf32>
    %30 = tpu.matmul %28, %29, %cst_12 {dimension_numbers = #tpu.dot_dimension_numbers<[1], [0], [0], [1], [0, 0, 1, 1], [], []>} : vector<8x32xbf16>, vector<32x96xbf16>, vector<8x96xf32> -> vector<8x96xf32>
    %c0_13 = arith.constant 0 : index
    %c0_14 = arith.constant 0 : index
    %31 = vector.load %arg6[%c0_13, %c0_14] : memref<1x96xf32, #tpu.memory_space<vmem>>, vector<1x96xf32>
    %32 = vector.broadcast %31 : vector<1x96xf32> to vector<8x96xf32>
    %33 = arith.addf %30, %32 : vector<8x96xf32>
    %34 = vector.extract_strided_slice %33 {offsets = [0, 0], sizes = [8, 32], strides = [1, 1]} : vector<8x96xf32> to vector<8x32xf32>
    %35 = arith.truncf %34 : vector<8x32xf32> to vector<8x32xbf16>
    %36 = vector.extract_strided_slice %33 {offsets = [0, 32], sizes = [8, 32], strides = [1, 1]} : vector<8x96xf32> to vector<8x32xf32>
    %37 = arith.truncf %36 : vector<8x32xf32> to vector<8x32xbf16>
    %38 = arith.index_cast %3 : i32 to index
    %c0_15 = arith.constant 0 : index
    %39 = vector.load %arg16[%38, %c0_15] : memref<8x32xbf16, #tpu.memory_space<vmem>>, vector<8x32xbf16>
    tpu.vector_store %arg16[%38, %c0_15], %37 {strides = array<i32>} : memref<8x32xbf16, #tpu.memory_space<vmem>>, vector<8x32xbf16>,
    %40 = vector.extract_strided_slice %33 {offsets = [0, 64], sizes = [8, 32], strides = [1, 1]} : vector<8x96xf32> to vector<8x32xf32>
    %41 = arith.truncf %40 : vector<8x32xf32> to vector<8x32xbf16>
    %42 = arith.index_cast %3 : i32 to index
    %c0_16 = arith.constant 0 : index
    %43 = vector.load %arg17[%42, %c0_16] : memref<8x32xbf16, #tpu.memory_space<vmem>>, vector<8x32xbf16>
    tpu.vector_store %arg17[%42, %c0_16], %41 {strides = array<i32>} : memref<8x32xbf16, #tpu.memory_space<vmem>>, vector<8x32xbf16>,
    %44 = vector.extract_strided_slice %35 {offsets = [0, 0], sizes = [8, 8], strides = [1, 1]} : vector<8x32xbf16> to vector<8x8xbf16>
    %45 = vector.extract_strided_slice %35 {offsets = [0, 8], sizes = [8, 8], strides = [1, 1]} : vector<8x32xbf16> to vector<8x8xbf16>
    %46 = vector.extract_strided_slice %35 {offsets = [0, 16], sizes = [8, 8], strides = [1, 1]} : vector<8x32xbf16> to vector<8x8xbf16>
    %47 = vector.extract_strided_slice %35 {offsets = [0, 24], sizes = [8, 8], strides = [1, 1]} : vector<8x32xbf16> to vector<8x8xbf16>
    %48 = tpu.iota {dimensions = array<i32: 0>} : vector<8x8xi32>
    %49 = tpu.iota {dimensions = array<i32: 1>} : vector<8x8xi32>
    %50 = arith.cmpi sge, %48, %49 : vector<8x8xi32>
    %cst_17 = arith.constant 0.000000e+00 : f32
    %cst_18 = arith.constant -1.000000e+30 : f32
    %51 = vector.broadcast %cst_17 : f32 to vector<8x8xf32>
    %52 = vector.broadcast %cst_18 : f32 to vector<8x8xf32>
    %53 = arith.select %50, %51, %52 : vector<8x8xi1>, vector<8x8xf32>
    %cst_19 = arith.constant 0.000000e+00 : f32
    %54 = vector.broadcast %cst_19 : f32 to vector<8x8xf32>
    %cst_20 = arith.constant -1.000000e+30 : f32
    %55 = vector.broadcast %cst_20 : f32 to vector<8x1xf32>
    %cst_21 = arith.constant -1.000000e+30 : f32
    %56 = vector.broadcast %cst_21 : f32 to vector<8x1xf32>
    %cst_22 = arith.constant -1.000000e+30 : f32
    %57 = vector.broadcast %cst_22 : f32 to vector<8x1xf32>
    %cst_23 = arith.constant -1.000000e+30 : f32
    %58 = vector.broadcast %cst_23 : f32 to vector<8x1xf32>
    %cst_24 = arith.constant 0.000000e+00 : f32
    %59 = vector.broadcast %cst_24 : f32 to vector<8x1xf32>
    %cst_25 = arith.constant 0.000000e+00 : f32
    %60 = vector.broadcast %cst_25 : f32 to vector<8x1xf32>
    %cst_26 = arith.constant 0.000000e+00 : f32
    %61 = vector.broadcast %cst_26 : f32 to vector<8x1xf32>
    %cst_27 = arith.constant 0.000000e+00 : f32
    %62 = vector.broadcast %cst_27 : f32 to vector<8x1xf32>
    %cst_28 = arith.constant 0.000000e+00 : f32
    %63 = vector.broadcast %cst_28 : f32 to vector<8x8xf32>
    %cst_29 = arith.constant 0.000000e+00 : f32
    %64 = vector.broadcast %cst_29 : f32 to vector<8x8xf32>
    %cst_30 = arith.constant 0.000000e+00 : f32
    %65 = vector.broadcast %cst_30 : f32 to vector<8x8xf32>
    %cst_31 = arith.constant 0.000000e+00 : f32
    %66 = vector.broadcast %cst_31 : f32 to vector<8x8xf32>
    %c1_i32 = arith.constant 1 : i32
    %67 = arith.addi %arg1, %c1_i32 : i32
    %c0_i32 = arith.constant 0 : i32
    %68 = arith.subi %67, %c0_i32 : i32
    %69 = arith.addi %c0_i32, %68 : i32
    %c1_i32_32 = arith.constant 1 : i32
    %70:12 = scf.for %arg18 = %c0_i32 to %69 step %c1_i32_32 iter_args(%arg19 = %55, %arg20 = %56, %arg21 = %57, %arg22 = %58, %arg23 = %59, %arg24 = %60, %arg25 = %61, %arg26 = %62, %arg27 = %63, %arg28 = %64, %arg29 = %65, %arg30 = %66) -> (vector<8x1xf32>, vector<8x1xf32>, vector<8x1xf32>, vector<8x1xf32>, vector<8x1xf32>, vector<8x1xf32>, vector<8x1xf32>, vector<8x1xf32>, vector<8x8xf32>, vector<8x8xf32>, vector<8x8xf32>, vector<8x8xf32>)  : i32 {
      %c8_i32_64 = arith.constant 8 : i32
      %147 = arith.muli %arg18, %c8_i32_64 : i32
      %148 = tpu.assume_multiple %147, 8 : i32
      %149 = arith.index_cast %148 : i32 to index
      %c0_65 = arith.constant 0 : index
      %150 = vector.load %arg16[%149, %c0_65] : memref<8x32xbf16, #tpu.memory_space<vmem>>, vector<8x32xbf16>
      %151 = arith.index_cast %148 : i32 to index
      %c0_66 = arith.constant 0 : index
      %152 = vector.load %arg17[%151, %c0_66] : memref<8x32xbf16, #tpu.memory_space<vmem>>, vector<8x32xbf16>
      %153 = arith.cmpi eq, %arg18, %arg1 : i32
      %154 = arith.select %153, %53, %54 : vector<8x8xf32>
      %155 = vector.extract_strided_slice %150 {offsets = [0, 0], sizes = [8, 8], strides = [1, 1]} : vector<8x32xbf16> to vector<8x8xbf16>
      %156 = vector.extract_strided_slice %152 {offsets = [0, 0], sizes = [8, 8], strides = [1, 1]} : vector<8x32xbf16> to vector<8x8xbf16>
      %cst_67 = arith.constant dense<0.000000e+00> : vector<8x8xf32>
      %157 = tpu.matmul %44, %155, %cst_67 {dimension_numbers = #tpu.dot_dimension_numbers<[1], [1], [0], [0], [0, 0, 1, 0], [], []>} : vector<8x8xbf16>, vector<8x8xbf16>, vector<8x8xf32> -> vector<8x8xf32>
      %158 = arith.addf %157, %154 : vector<8x8xf32>
      %cst_68 = arith.constant dense<0xFF800000> : vector<8xf32>
      %159 = vector.multi_reduction <maximumf>, %158, %cst_68 [1] : vector<8x8xf32> to vector<8xf32>
      %160 = vector.shape_cast %159 : vector<8xf32> to vector<8x1xf32>
      %161 = arith.maximumf %arg19, %160 : vector<8x1xf32>
      %162 = arith.subf %arg19, %161 : vector<8x1xf32>
      %163 = math.exp %162 : vector<8x1xf32>
      %164 = vector.broadcast %161 : vector<8x1xf32> to vector<8x8xf32>
      %165 = arith.subf %158, %164 : vector<8x8xf32>
      %166 = math.exp %165 : vector<8x8xf32>
      %167 = arith.mulf %163, %arg23 : vector<8x1xf32>
      %cst_69 = arith.constant dense<0.000000e+00> : vector<8xf32>
      %168 = vector.multi_reduction <add>, %166, %cst_69 [1] : vector<8x8xf32> to vector<8xf32>
      %169 = vector.shape_cast %168 : vector<8xf32> to vector<8x1xf32>
      %170 = arith.addf %167, %169 : vector<8x1xf32>
      %171 = vector.broadcast %163 : vector<8x1xf32> to vector<8x8xf32>
      %172 = arith.mulf %171, %arg27 : vector<8x8xf32>
      %173 = arith.truncf %166 : vector<8x8xf32> to vector<8x8xbf16>
      %cst_70 = arith.constant dense<0.000000e+00> : vector<8x8xf32>
      %174 = tpu.matmul %173, %156, %cst_70 {dimension_numbers = #tpu.dot_dimension_numbers<[1], [0], [0], [1], [0, 0, 1, 1], [], []>} : vector<8x8xbf16>, vector<8x8xbf16>, vector<8x8xf32> -> vector<8x8xf32>
      %175 = arith.addf %172, %174 : vector<8x8xf32>
      %176 = vector.extract_strided_slice %150 {offsets = [0, 8], sizes = [8, 8], strides = [1, 1]} : vector<8x32xbf16> to vector<8x8xbf16>
      %177 = vector.extract_strided_slice %152 {offsets = [0, 8], sizes = [8, 8], strides = [1, 1]} : vector<8x32xbf16> to vector<8x8xbf16>
      %cst_71 = arith.constant dense<0.000000e+00> : vector<8x8xf32>
      %178 = tpu.matmul %45, %176, %cst_71 {dimension_numbers = #tpu.dot_dimension_numbers<[1], [1], [0], [0], [0, 0, 1, 0], [], []>} : vector<8x8xbf16>, vector<8x8xbf16>, vector<8x8xf32> -> vector<8x8xf32>
      %179 = arith.addf %178, %154 : vector<8x8xf32>
      %cst_72 = arith.constant dense<0xFF800000> : vector<8xf32>
      %180 = vector.multi_reduction <maximumf>, %179, %cst_72 [1] : vector<8x8xf32> to vector<8xf32>
      %181 = vector.shape_cast %180 : vector<8xf32> to vector<8x1xf32>
      %182 = arith.maximumf %arg20, %181 : vector<8x1xf32>
      %183 = arith.subf %arg20, %182 : vector<8x1xf32>
      %184 = math.exp %183 : vector<8x1xf32>
      %185 = vector.broadcast %182 : vector<8x1xf32> to vector<8x8xf32>
      %186 = arith.subf %179, %185 : vector<8x8xf32>
      %187 = math.exp %186 : vector<8x8xf32>
      %188 = arith.mulf %184, %arg24 : vector<8x1xf32>
      %cst_73 = arith.constant dense<0.000000e+00> : vector<8xf32>
      %189 = vector.multi_reduction <add>, %187, %cst_73 [1] : vector<8x8xf32> to vector<8xf32>
      %190 = vector.shape_cast %189 : vector<8xf32> to vector<8x1xf32>
      %191 = arith.addf %188, %190 : vector<8x1xf32>
      %192 = vector.broadcast %184 : vector<8x1xf32> to vector<8x8xf32>
      %193 = arith.mulf %192, %arg28 : vector<8x8xf32>
      %194 = arith.truncf %187 : vector<8x8xf32> to vector<8x8xbf16>
      %cst_74 = arith.constant dense<0.000000e+00> : vector<8x8xf32>
      %195 = tpu.matmul %194, %177, %cst_74 {dimension_numbers = #tpu.dot_dimension_numbers<[1], [0], [0], [1], [0, 0, 1, 1], [], []>} : vector<8x8xbf16>, vector<8x8xbf16>, vector<8x8xf32> -> vector<8x8xf32>
      %196 = arith.addf %193, %195 : vector<8x8xf32>
      %197 = vector.extract_strided_slice %150 {offsets = [0, 16], sizes = [8, 8], strides = [1, 1]} : vector<8x32xbf16> to vector<8x8xbf16>
      %198 = vector.extract_strided_slice %152 {offsets = [0, 16], sizes = [8, 8], strides = [1, 1]} : vector<8x32xbf16> to vector<8x8xbf16>
      %cst_75 = arith.constant dense<0.000000e+00> : vector<8x8xf32>
      %199 = tpu.matmul %46, %197, %cst_75 {dimension_numbers = #tpu.dot_dimension_numbers<[1], [1], [0], [0], [0, 0, 1, 0], [], []>} : vector<8x8xbf16>, vector<8x8xbf16>, vector<8x8xf32> -> vector<8x8xf32>
      %200 = arith.addf %199, %154 : vector<8x8xf32>
      %cst_76 = arith.constant dense<0xFF800000> : vector<8xf32>
      %201 = vector.multi_reduction <maximumf>, %200, %cst_76 [1] : vector<8x8xf32> to vector<8xf32>
      %202 = vector.shape_cast %201 : vector<8xf32> to vector<8x1xf32>
      %203 = arith.maximumf %arg21, %202 : vector<8x1xf32>
      %204 = arith.subf %arg21, %203 : vector<8x1xf32>
      %205 = math.exp %204 : vector<8x1xf32>
      %206 = vector.broadcast %203 : vector<8x1xf32> to vector<8x8xf32>
      %207 = arith.subf %200, %206 : vector<8x8xf32>
      %208 = math.exp %207 : vector<8x8xf32>
      %209 = arith.mulf %205, %arg25 : vector<8x1xf32>
      %cst_77 = arith.constant dense<0.000000e+00> : vector<8xf32>
      %210 = vector.multi_reduction <add>, %208, %cst_77 [1] : vector<8x8xf32> to vector<8xf32>
      %211 = vector.shape_cast %210 : vector<8xf32> to vector<8x1xf32>
      %212 = arith.addf %209, %211 : vector<8x1xf32>
      %213 = vector.broadcast %205 : vector<8x1xf32> to vector<8x8xf32>
      %214 = arith.mulf %213, %arg29 : vector<8x8xf32>
      %215 = arith.truncf %208 : vector<8x8xf32> to vector<8x8xbf16>
      %cst_78 = arith.constant dense<0.000000e+00> : vector<8x8xf32>
      %216 = tpu.matmul %215, %198, %cst_78 {dimension_numbers = #tpu.dot_dimension_numbers<[1], [0], [0], [1], [0, 0, 1, 1], [], []>} : vector<8x8xbf16>, vector<8x8xbf16>, vector<8x8xf32> -> vector<8x8xf32>
      %217 = arith.addf %214, %216 : vector<8x8xf32>
      %218 = vector.extract_strided_slice %150 {offsets = [0, 24], sizes = [8, 8], strides = [1, 1]} : vector<8x32xbf16> to vector<8x8xbf16>
      %219 = vector.extract_strided_slice %152 {offsets = [0, 24], sizes = [8, 8], strides = [1, 1]} : vector<8x32xbf16> to vector<8x8xbf16>
      %cst_79 = arith.constant dense<0.000000e+00> : vector<8x8xf32>
      %220 = tpu.matmul %47, %218, %cst_79 {dimension_numbers = #tpu.dot_dimension_numbers<[1], [1], [0], [0], [0, 0, 1, 0], [], []>} : vector<8x8xbf16>, vector<8x8xbf16>, vector<8x8xf32> -> vector<8x8xf32>
      %221 = arith.addf %220, %154 : vector<8x8xf32>
      %cst_80 = arith.constant dense<0xFF800000> : vector<8xf32>
      %222 = vector.multi_reduction <maximumf>, %221, %cst_80 [1] : vector<8x8xf32> to vector<8xf32>
      %223 = vector.shape_cast %222 : vector<8xf32> to vector<8x1xf32>
      %224 = arith.maximumf %arg22, %223 : vector<8x1xf32>
      %225 = arith.subf %arg22, %224 : vector<8x1xf32>
      %226 = math.exp %225 : vector<8x1xf32>
      %227 = vector.broadcast %224 : vector<8x1xf32> to vector<8x8xf32>
      %228 = arith.subf %221, %227 : vector<8x8xf32>
      %229 = math.exp %228 : vector<8x8xf32>
      %230 = arith.mulf %226, %arg26 : vector<8x1xf32>
      %cst_81 = arith.constant dense<0.000000e+00> : vector<8xf32>
      %231 = vector.multi_reduction <add>, %229, %cst_81 [1] : vector<8x8xf32> to vector<8xf32>
      %232 = vector.shape_cast %231 : vector<8xf32> to vector<8x1xf32>
      %233 = arith.addf %230, %232 : vector<8x1xf32>
      %234 = vector.broadcast %226 : vector<8x1xf32> to vector<8x8xf32>
      %235 = arith.mulf %234, %arg30 : vector<8x8xf32>
      %236 = arith.truncf %229 : vector<8x8xf32> to vector<8x8xbf16>
      %cst_82 = arith.constant dense<0.000000e+00> : vector<8x8xf32>
      %237 = tpu.matmul %236, %219, %cst_82 {dimension_numbers = #tpu.dot_dimension_numbers<[1], [0], [0], [1], [0, 0, 1, 1], [], []>} : vector<8x8xbf16>, vector<8x8xbf16>, vector<8x8xf32> -> vector<8x8xf32>
      %238 = arith.addf %235, %237 : vector<8x8xf32>
      scf.yield %161, %182, %203, %224, %170, %191, %212, %233, %175, %196, %217, %238 : vector<8x1xf32>, vector<8x1xf32>, vector<8x1xf32>, vector<8x1xf32>, vector<8x1xf32>, vector<8x1xf32>, vector<8x1xf32>, vector<8x1xf32>, vector<8x8xf32>, vector<8x8xf32>, vector<8x8xf32>, vector<8x8xf32>
    }
    %71 = tpu.reciprocal %70#4 {approx = true} : vector<8x1xf32> -> vector<8x1xf32>
    %72 = vector.broadcast %71 : vector<8x1xf32> to vector<8x8xf32>
    %73 = arith.mulf %70#8, %72 : vector<8x8xf32>
    %74 = arith.truncf %73 : vector<8x8xf32> to vector<8x8xbf16>
    %75 = tpu.reciprocal %70#5 {approx = true} : vector<8x1xf32> -> vector<8x1xf32>
    %76 = vector.broadcast %75 : vector<8x1xf32> to vector<8x8xf32>
    %77 = arith.mulf %70#9, %76 : vector<8x8xf32>
    %78 = arith.truncf %77 : vector<8x8xf32> to vector<8x8xbf16>
    %79 = tpu.reciprocal %70#6 {approx = true} : vector<8x1xf32> -> vector<8x1xf32>
    %80 = vector.broadcast %79 : vector<8x1xf32> to vector<8x8xf32>
    %81 = arith.mulf %70#10, %80 : vector<8x8xf32>
    %82 = arith.truncf %81 : vector<8x8xf32> to vector<8x8xbf16>
    %83 = tpu.reciprocal %70#7 {approx = true} : vector<8x1xf32> -> vector<8x1xf32>
    %84 = vector.broadcast %83 : vector<8x1xf32> to vector<8x8xf32>
    %85 = arith.mulf %70#11, %84 : vector<8x8xf32>
    %86 = arith.truncf %85 : vector<8x8xf32> to vector<8x8xbf16>
    %87 = tpu.concatenate %74, %78, %82, %86 in 1 : vector<8x8xbf16>, vector<8x8xbf16>, vector<8x8xbf16>, vector<8x8xbf16> -> vector<8x32xbf16>
    %c0_33 = arith.constant 0 : index
    %c0_34 = arith.constant 0 : index
    %88 = vector.load %arg7[%c0_33, %c0_34] : memref<32x32xbf16, #tpu.memory_space<vmem>>, vector<32x32xbf16>
    %cst_35 = arith.constant dense<0.000000e+00> : vector<8x32xf32>
    %89 = tpu.matmul %87, %88, %cst_35 {dimension_numbers = #tpu.dot_dimension_numbers<[1], [0], [0], [1], [0, 0, 1, 1], [], []>} : vector<8x32xbf16>, vector<32x32xbf16>, vector<8x32xf32> -> vector<8x32xf32>
    %c0_36 = arith.constant 0 : index
    %c0_37 = arith.constant 0 : index
    %90 = vector.load %arg8[%c0_36, %c0_37] : memref<1x32xf32, #tpu.memory_space<vmem>>, vector<1x32xf32>
    %91 = vector.broadcast %90 : vector<1x32xf32> to vector<8x32xf32>
    %92 = arith.addf %89, %91 : vector<8x32xf32>
    %93 = arith.addf %1, %92 : vector<8x32xf32>
    %c0_38 = arith.constant 0 : index
    %c0_39 = arith.constant 0 : index
    %94 = vector.load %arg9[%c0_38, %c0_39] : memref<1x32xf32, #tpu.memory_space<vmem>>, vector<1x32xf32>
    %c0_40 = arith.constant 0 : index
    %c0_41 = arith.constant 0 : index
    %95 = vector.load %arg10[%c0_40, %c0_41] : memref<1x32xf32, #tpu.memory_space<vmem>>, vector<1x32xf32>
    %cst_42 = arith.constant dense<0.000000e+00> : vector<8xf32>
    %96 = vector.multi_reduction <add>, %93, %cst_42 [1] : vector<8x32xf32> to vector<8xf32>
    %97 = vector.shape_cast %96 : vector<8xf32> to vector<8x1xf32>
    %cst_43 = arith.constant 3.200000e+01 : f32
    %98 = vector.broadcast %cst_43 : f32 to vector<8x1xf32>
    %99 = arith.divf %97, %98 : vector<8x1xf32>
    %100 = vector.broadcast %99 : vector<8x1xf32> to vector<8x32xf32>
    %101 = arith.subf %93, %100 : vector<8x32xf32>
    %102 = arith.mulf %101, %101 : vector<8x32xf32>
    %cst_44 = arith.constant dense<0.000000e+00> : vector<8xf32>
    %103 = vector.multi_reduction <add>, %102, %cst_44 [1] : vector<8x32xf32> to vector<8xf32>
    %104 = vector.shape_cast %103 : vector<8xf32> to vector<8x1xf32>
    %cst_45 = arith.constant 3.200000e+01 : f32
    %105 = vector.broadcast %cst_45 : f32 to vector<8x1xf32>
    %106 = arith.divf %104, %105 : vector<8x1xf32>
    %107 = vector.broadcast %99 : vector<8x1xf32> to vector<8x32xf32>
    %108 = arith.subf %93, %107 : vector<8x32xf32>
    %cst_46 = arith.constant 9.99999974E-6 : f32
    %109 = vector.broadcast %cst_46 : f32 to vector<8x1xf32>
    %110 = arith.addf %106, %109 : vector<8x1xf32>
    %111 = math.rsqrt %110 : vector<8x1xf32>
    %112 = vector.broadcast %111 : vector<8x1xf32> to vector<8x32xf32>
    %113 = arith.mulf %108, %112 : vector<8x32xf32>
    %114 = vector.broadcast %94 : vector<1x32xf32> to vector<8x32xf32>
    %115 = arith.mulf %113, %114 : vector<8x32xf32>
    %116 = vector.broadcast %95 : vector<1x32xf32> to vector<8x32xf32>
    %117 = arith.addf %115, %116 : vector<8x32xf32>
    %118 = arith.truncf %117 : vector<8x32xf32> to vector<8x32xbf16>
    %c0_47 = arith.constant 0 : index
    %c0_48 = arith.constant 0 : index
    %119 = vector.load %arg11[%c0_47, %c0_48] : memref<32x128xbf16, #tpu.memory_space<vmem>>, vector<32x128xbf16>
    %cst_49 = arith.constant dense<0.000000e+00> : vector<8x128xf32>
    %120 = tpu.matmul %118, %119, %cst_49 {dimension_numbers = #tpu.dot_dimension_numbers<[1], [0], [0], [1], [0, 0, 1, 1], [], []>} : vector<8x32xbf16>, vector<32x128xbf16>, vector<8x128xf32> -> vector<8x128xf32>
    %c0_50 = arith.constant 0 : index
    %c0_51 = arith.constant 0 : index
    %121 = vector.load %arg12[%c0_50, %c0_51] : memref<1x128xf32, #tpu.memory_space<vmem>>, vector<1x128xf32>
    %122 = vector.broadcast %121 : vector<1x128xf32> to vector<8x128xf32>
    %123 = arith.addf %120, %122 : vector<8x128xf32>
    %cst_52 = arith.constant 5.000000e-01 : f32
    %124 = vector.broadcast %cst_52 : f32 to vector<8x128xf32>
    %125 = arith.mulf %124, %123 : vector<8x128xf32>
    %cst_53 = arith.constant 4.471500e-02 : f32
    %126 = vector.broadcast %cst_53 : f32 to vector<8x128xf32>
    %127 = arith.mulf %126, %123 : vector<8x128xf32>
    %128 = arith.mulf %127, %123 : vector<8x128xf32>
    %129 = arith.mulf %128, %123 : vector<8x128xf32>
    %130 = arith.addf %123, %129 : vector<8x128xf32>
    %cst_54 = arith.constant 0.797884583 : f32
    %131 = vector.broadcast %cst_54 : f32 to vector<8x128xf32>
    %132 = arith.mulf %131, %130 : vector<8x128xf32>
    %133 = math.tanh %132 : vector<8x128xf32>
    %cst_55 = arith.constant 1.000000e+00 : f32
    %134 = vector.broadcast %cst_55 : f32 to vector<8x128xf32>
    %135 = arith.addf %134, %133 : vector<8x128xf32>
    %136 = arith.mulf %125, %135 : vector<8x128xf32>
    %137 = arith.truncf %136 : vector<8x128xf32> to vector<8x128xbf16>
    %c0_56 = arith.constant 0 : index
    %c0_57 = arith.constant 0 : index
    %138 = vector.load %arg13[%c0_56, %c0_57] : memref<128x32xbf16, #tpu.memory_space<vmem>>, vector<128x32xbf16>
    %cst_58 = arith.constant dense<0.000000e+00> : vector<8x32xf32>
    %139 = tpu.matmul %137, %138, %cst_58 {dimension_numbers = #tpu.dot_dimension_numbers<[1], [0], [0], [1], [0, 0, 1, 1], [], []>} : vector<8x128xbf16>, vector<128x32xbf16>, vector<8x32xf32> -> vector<8x32xf32>
    %c0_59 = arith.constant 0 : index
    %c0_60 = arith.constant 0 : index
    %140 = vector.load %arg14[%c0_59, %c0_60] : memref<1x32xf32, #tpu.memory_space<vmem>>, vector<1x32xf32>
    %141 = vector.broadcast %140 : vector<1x32xf32> to vector<8x32xf32>
    %142 = arith.addf %139, %141 : vector<8x32xf32>
    %143 = arith.addf %93, %142 : vector<8x32xf32>
    %c0_61 = arith.constant 0 : index
    %c0_62 = arith.constant 0 : index
    %c0_63 = arith.constant 0 : index
    %144 = vector.load %arg15[%c0_61, %c0_62, %c0_63] : memref<1x8x32xf32, #tpu.memory_space<vmem>>, vector<1x8x32xf32>
    %145 = vector.shape_cast %144 : vector<1x8x32xf32> to vector<8x32xf32>
    %146 = vector.shape_cast %143 : vector<8x32xf32> to vector<1x8x32xf32>
    tpu.vector_store %arg15[%c0_61, %c0_62, %c0_63], %146 {strides = array<i32>} : memref<1x8x32xf32, #tpu.memory_space<vmem>>, vector<1x8x32xf32>,
    return
  }
  func.func @transform_0(%arg0: i32, %arg1: i32) -> (i32, i32, i32) {
    %c0_i32 = arith.constant 0 : i32
    %c0_i32_0 = arith.constant 0 : i32
    return %arg0, %arg1, %c0_i32 : i32, i32, i32
  }
  func.func @transform_1(%arg0: i32, %arg1: i32) -> (i32, i32) {
    %c0_i32 = arith.constant 0 : i32
    %c0_i32_0 = arith.constant 0 : i32
    %c0_i32_1 = arith.constant 0 : i32
    return %c0_i32, %c0_i32_0 : i32, i32
  }
  func.func @transform_2(%arg0: i32, %arg1: i32) -> (i32, i32) {
    %c0_i32 = arith.constant 0 : i32
    %c0_i32_0 = arith.constant 0 : i32
    %c0_i32_1 = arith.constant 0 : i32
    return %c0_i32, %c0_i32_0 : i32, i32
  }
  func.func @transform_3(%arg0: i32, %arg1: i32) -> (i32, i32) {
    %c0_i32 = arith.constant 0 : i32
    %c0_i32_0 = arith.constant 0 : i32
    %c0_i32_1 = arith.constant 0 : i32
    return %c0_i32, %c0_i32_0 : i32, i32
  }
  func.func @transform_4(%arg0: i32, %arg1: i32) -> (i32, i32) {
    %c0_i32 = arith.constant 0 : i32
    %c0_i32_0 = arith.constant 0 : i32
    %c0_i32_1 = arith.constant 0 : i32
    return %c0_i32, %c0_i32_0 : i32, i32
  }
  func.func @transform_5(%arg0: i32, %arg1: i32) -> (i32, i32) {
    %c0_i32 = arith.constant 0 : i32
    %c0_i32_0 = arith.constant 0 : i32
    %c0_i32_1 = arith.constant 0 : i32
    return %c0_i32, %c0_i32_0 : i32, i32
  }
  func.func @transform_6(%arg0: i32, %arg1: i32) -> (i32, i32) {
    %c0_i32 = arith.constant 0 : i32
    %c0_i32_0 = arith.constant 0 : i32
    %c0_i32_1 = arith.constant 0 : i32
    return %c0_i32, %c0_i32_0 : i32, i32
  }
  func.func @transform_7(%arg0: i32, %arg1: i32) -> (i32, i32) {
    %c0_i32 = arith.constant 0 : i32
    %c0_i32_0 = arith.constant 0 : i32
    %c0_i32_1 = arith.constant 0 : i32
    return %c0_i32, %c0_i32_0 : i32, i32
  }
  func.func @transform_8(%arg0: i32, %arg1: i32) -> (i32, i32) {
    %c0_i32 = arith.constant 0 : i32
    %c0_i32_0 = arith.constant 0 : i32
    %c0_i32_1 = arith.constant 0 : i32
    return %c0_i32, %c0_i32_0 : i32, i32
  }
  func.func @transform_9(%arg0: i32, %arg1: i32) -> (i32, i32) {
    %c0_i32 = arith.constant 0 : i32
    %c0_i32_0 = arith.constant 0 : i32
    %c0_i32_1 = arith.constant 0 : i32
    return %c0_i32, %c0_i32_0 : i32, i32
  }
  func.func @transform_10(%arg0: i32, %arg1: i32) -> (i32, i32) {
    %c0_i32 = arith.constant 0 : i32
    %c0_i32_0 = arith.constant 0 : i32
    %c0_i32_1 = arith.constant 0 : i32
    return %c0_i32, %c0_i32_0 : i32, i32
  }
  func.func @transform_11(%arg0: i32, %arg1: i32) -> (i32, i32) {
    %c0_i32 = arith.constant 0 : i32
    %c0_i32_0 = arith.constant 0 : i32
    %c0_i32_1 = arith.constant 0 : i32
    return %c0_i32, %c0_i32_0 : i32, i32
  }
  func.func @transform_12(%arg0: i32, %arg1: i32) -> (i32, i32) {
    %c0_i32 = arith.constant 0 : i32
    %c0_i32_0 = arith.constant 0 : i32
    %c0_i32_1 = arith.constant 0 : i32
    return %c0_i32, %c0_i32_0 : i32, i32
  }
  func.func @transform_13(%arg0: i32, %arg1: i32) -> (i32, i32, i32) {
    %c0_i32 = arith.constant 0 : i32
    %c0_i32_0 = arith.constant 0 : i32
    return %arg0, %arg1, %c0_i32 : i32, i32, i32
  }
}

</mosaic_0001>

<llo_original>
// kernel: tpu_custom_call.1
$region0: #{tpu_custom_call.1}
  #allocation0 [shape = 'u32[]', space=smem, size = 0x4, offset = 0x4, fixed_abs, tag = 'smem constant byte address 0x4 - core index']
  #allocation1 [shape = 'u32[144,128]{1,0:T(1,128)}', space=vmem, size = 0x12000, scoped, tag = 'internal scratch']
  #allocation2 [shape = 'bf16[8,32]{1,0:T(8,128)(2,1)}', space=vmem, size = 0x800, scoped, tag = 'scratch operand']
  #allocation3 [shape = 'bf16[8,32]{1,0:T(8,128)(2,1)}', space=vmem, size = 0x800, scoped, tag = 'scratch operand']
  %s0 = inlined_call_operand.vmem [shape: f32[2,8,32], index: 0, kind: input, shape index: {}]
  %s1 = inlined_call_operand.vmem [shape: f32[1,32], index: 1, kind: input, shape index: {}]
  %s2 = inlined_call_operand.vmem [shape: f32[1,32], index: 2, kind: input, shape index: {}]
  %s3 = inlined_call_operand.vmem [shape: bf16[32,96], index: 3, kind: input, shape index: {}]
  %s4 = inlined_call_operand.vmem [shape: f32[1,96], index: 4, kind: input, shape index: {}]
  %s5 = inlined_call_operand.vmem [shape: bf16[32,32], index: 5, kind: input, shape index: {}]
  %s6 = inlined_call_operand.vmem [shape: f32[1,32], index: 6, kind: input, shape index: {}]
  %s7 = inlined_call_operand.vmem [shape: f32[1,32], index: 7, kind: input, shape index: {}]
  %s8 = inlined_call_operand.vmem [shape: f32[1,32], index: 8, kind: input, shape index: {}]
  %s9 = inlined_call_operand.vmem [shape: bf16[32,128], index: 9, kind: input, shape index: {}]
  %s10 = inlined_call_operand.vmem [shape: f32[1,128], index: 10, kind: input, shape index: {}]
  %s11 = inlined_call_operand.vmem [shape: bf16[128,32], index: 11, kind: input, shape index: {}]
  %s12 = inlined_call_operand.vmem [shape: f32[1,32], index: 12, kind: input, shape index: {}]
  %s13 = inlined_call_operand.hbm [shape: f32[2,8,32], index: 13, kind: output, shape index: {}]
  %s14 = sld [smem:[#allocation0]]
  $region92: #{tpu_custom_call.1} parent=0
    _
  %s16 = ssub.s32 1, %s14
  %s17 = scalar_select 0, %s16, %s14
  $region1: #{tpu_custom_call.1} parent=0
    #allocation4 [shape = 'u8[8192]{0}', space=vmem, size = 0x2000, scoped, tag = 'output window, operand 0']
    #allocation5 [shape = 's32[2]{0}', space=sflag, size = 0x8, scoped, tag = 'scoped memory for tpu_custom_call.1']
    %18 = vsyncpa [#allocation5], 0
    %s19 = scalar_lea.sflag [#allocation5], 1
    %20 = vsyncpa %s19, 0
    loop: start=0, step=1, limit=4
    $region2: #{tpu_custom_call.1} parent=1 // loop_pre_header
      _
    $region3: #{tpu_custom_call.1} parent=1 // loop_header
      %s22 = sphi 0, %s26
      %p23 = scmp.ge.s32.totalorder %s22, 4
      %s29 = sphi 0, %s41
      %s30 = sphi 0, %s37
      %s31 = sphi 0, %s29
      %s32 = sphi 0, %s30
      %s33 = sphi 0, %s31
      %s34 = sphi 0, %s32
      %s46 = sphi 0, %s48
      %s49 = sphi 0, %s46
      %s50 = sphi 0, %s49
      %s66 = sphi 0, %s50
      %s70 = sphi 0, %s70
      %s72 = sphi 0, %s70
      %s73 = sphi 0, %s72
      %s87 = sphi 0, %s73
      %s91 = sphi 0, %s91
      %s93 = sphi 0, %s91
      %s94 = sphi 0, %s93
      %s108 = sphi 0, %s94
      %s112 = sphi 0, %s112
      %s114 = sphi 0, %s112
      %s115 = sphi 0, %s114
      %s129 = sphi 0, %s115
      %s133 = sphi 0, %s133
      %s135 = sphi 0, %s133
      %s136 = sphi 0, %s135
      %s150 = sphi 0, %s136
      %s154 = sphi 0, %s154
      %s156 = sphi 0, %s154
      %s157 = sphi 0, %s156
      %s171 = sphi 0, %s157
      %s175 = sphi 0, %s175
      %s177 = sphi 0, %s175
      %s178 = sphi 0, %s177
      %s192 = sphi 0, %s178
      %s196 = sphi 0, %s196
      %s198 = sphi 0, %s196
      %s199 = sphi 0, %s198
      %s213 = sphi 0, %s199
      %s217 = sphi 0, %s217
      %s219 = sphi 0, %s217
      %s220 = sphi 0, %s219
      %s234 = sphi 0, %s220
      %s238 = sphi 0, %s238
      %s240 = sphi 0, %s238
      %s241 = sphi 0, %s240
      %s255 = sphi 0, %s241
      %s259 = sphi 0, %s259
      %s261 = sphi 0, %s259
      %s262 = sphi 0, %s261
      %s276 = sphi 0, %s262
      %s280 = sphi 0, %s280
      %s282 = sphi 0, %s280
      %s283 = sphi 0, %s282
      %s297 = sphi 0, %s283
      %s301 = sphi 0, %s301
      %s303 = sphi 0, %s301
      %s304 = sphi 0, %s303
      %s318 = sphi 0, %s304
      %s326 = sphi 0, %s328
      %s329 = sphi 0, %s326
      %s330 = sphi 0, %s329
      %s346 = sphi 0, %s330
    $region4: #{tpu_custom_call.1} parent=1 // loop_header_branch
      %25 = sbr.rel (%p23) target = $region8
    $region5: #{tpu_custom_call.1} parent=1 // loop_body
      %s27 = ssub.s32 %s22, 1
      %s28 = ssub.s32 %s22, 2
      %s35 = sadd.s32 1, %s30
      %p36 = scmp.ge.s32.totalorder %s35, 1
      %s37 = scalar_select %p36, 0, %s35
      %s38 = sadd.s32 1, %s29
      %s39 = scalar_select %p36, %s38, %s29
      %p40 = scmp.ge.s32.totalorder %s39, 2
      %s41 = scalar_select %p40, 0, %s39
      %s42 = ssub.s32 %s29, %s41
      %s43 = ssub.s32 %s30, %s37
      %s44 = sor.u32 %s42, %s43
      %p45 = scmp.eq.s32.totalorder %s44, 0
      %s47 = sadd.s32 %s46, 1
      %s48 = scalar_select %p45, %s46, %s47
      %p51 = pneg %p45
      %p52 = scmp.eq.s32.totalorder %s22, 1
      %p53 = por %p51, %p52
      %p54 = scmp.ne.s32.totalorder %s46, %s49
      %p55 = scmp.eq.s32.totalorder %s22, 0
      %p56 = por %p54, %p55
      %p57 = scmp.ne.s32.totalorder %s46, %s49
      %p58 = scmp.eq.s32.totalorder %s27, 1
      %p59 = por %p57, %p58
      %p60 = scmp.ne.s32.totalorder %s49, %s50
      %p61 = scmp.eq.s32.totalorder %s27, 0
      %p62 = por %p60, %p61
      %p63 = scmp.ne.s32.totalorder %s49, %s50
      %p64 = scmp.eq.s32.totalorder %s28, 1
      %p65 = por %p63, %p64
      %p67 = scmp.ne.s32.totalorder %s50, %s66
      %p68 = scmp.eq.s32.totalorder %s28, 0
      %p69 = por %p67, %p68
      %s71 = sadd.s32 %s70, 1
      %p74 = scmp.eq.s32.totalorder %s22, 1
      %p75 = scmp.ne.s32.totalorder %s70, %s72
      %p76 = scmp.eq.s32.totalorder %s22, 0
      %p77 = por %p75, %p76
      %p78 = scmp.ne.s32.totalorder %s70, %s72
      %p79 = scmp.eq.s32.totalorder %s27, 1
      %p80 = por %p78, %p79
      %p81 = scmp.ne.s32.totalorder %s72, %s73
      %p82 = scmp.eq.s32.totalorder %s27, 0
      %p83 = por %p81, %p82
      %p84 = scmp.ne.s32.totalorder %s72, %s73
      %p85 = scmp.eq.s32.totalorder %s28, 1
      %p86 = por %p84, %p85
      %p88 = scmp.ne.s32.totalorder %s73, %s87
      %p89 = scmp.eq.s32.totalorder %s28, 0
      %p90 = por %p88, %p89
      %s92 = sadd.s32 %s91, 1
      %p95 = scmp.eq.s32.totalorder %s22, 1
      %p96 = scmp.ne.s32.totalorder %s91, %s93
      %p97 = scmp.eq.s32.totalorder %s22, 0
      %p98 = por %p96, %p97
      %p99 = scmp.ne.s32.totalorder %s91, %s93
      %p100 = scmp.eq.s32.totalorder %s27, 1
      %p101 = por %p99, %p100
      %p102 = scmp.ne.s32.totalorder %s93, %s94
      %p103 = scmp.eq.s32.totalorder %s27, 0
      %p104 = por %p102, %p103
      %p105 = scmp.ne.s32.totalorder %s93, %s94
      %p106 = scmp.eq.s32.totalorder %s28, 1
      %p107 = por %p105, %p106
      %p109 = scmp.ne.s32.totalorder %s94, %s108
      %p110 = scmp.eq.s32.totalorder %s28, 0
      %p111 = por %p109, %p110
      %s113 = sadd.s32 %s112, 1
      %p116 = scmp.eq.s32.totalorder %s22, 1
      %p117 = scmp.ne.s32.totalorder %s112, %s114
      %p118 = scmp.eq.s32.totalorder %s22, 0
      %p119 = por %p117, %p118
      %p120 = scmp.ne.s32.totalorder %s112, %s114
      %p121 = scmp.eq.s32.totalorder %s27, 1
      %p122 = por %p120, %p121
      %p123 = scmp.ne.s32.totalorder %s114, %s115
      %p124 = scmp.eq.s32.totalorder %s27, 0
      %p125 = por %p123, %p124
      %p126 = scmp.ne.s32.totalorder %s114, %s115
      %p127 = scmp.eq.s32.totalorder %s28, 1
      %p128 = por %p126, %p127
      %p130 = scmp.ne.s32.totalorder %s115, %s129
      %p131 = scmp.eq.s32.totalorder %s28, 0
      %p132 = por %p130, %p131
      %s134 = sadd.s32 %s133, 1
      %p137 = scmp.eq.s32.totalorder %s22, 1
      %p138 = scmp.ne.s32.totalorder %s133, %s135
      %p139 = scmp.eq.s32.totalorder %s22, 0
      %p140 = por %p138, %p139
      %p141 = scmp.ne.s32.totalorder %s133, %s135
      %p142 = scmp.eq.s32.totalorder %s27, 1
      %p143 = por %p141, %p142
      %p144 = scmp.ne.s32.totalorder %s135, %s136
      %p145 = scmp.eq.s32.totalorder %s27, 0
      %p146 = por %p144, %p145
      %p147 = scmp.ne.s32.totalorder %s135, %s136
      %p148 = scmp.eq.s32.totalorder %s28, 1
      %p149 = por %p147, %p148
      %p151 = scmp.ne.s32.totalorder %s136, %s150
      %p152 = scmp.eq.s32.totalorder %s28, 0
      %p153 = por %p151, %p152
      %s155 = sadd.s32 %s154, 1
      %p158 = scmp.eq.s32.totalorder %s22, 1
      %p159 = scmp.ne.s32.totalorder %s154, %s156
      %p160 = scmp.eq.s32.totalorder %s22, 0
      %p161 = por %p159, %p160
      %p162 = scmp.ne.s32.totalorder %s154, %s156
      %p163 = scmp.eq.s32.totalorder %s27, 1
      %p164 = por %p162, %p163
      %p165 = scmp.ne.s32.totalorder %s156, %s157
      %p166 = scmp.eq.s32.totalorder %s27, 0
      %p167 = por %p165, %p166
      %p168 = scmp.ne.s32.totalorder %s156, %s157
      %p169 = scmp.eq.s32.totalorder %s28, 1
      %p170 = por %p168, %p169
      %p172 = scmp.ne.s32.totalorder %s157, %s171
      %p173 = scmp.eq.s32.totalorder %s28, 0
      %p174 = por %p172, %p173
      %s176 = sadd.s32 %s175, 1
      %p179 = scmp.eq.s32.totalorder %s22, 1
      %p180 = scmp.ne.s32.totalorder %s175, %s177
      %p181 = scmp.eq.s32.totalorder %s22, 0
      %p182 = por %p180, %p181
      %p183 = scmp.ne.s32.totalorder %s175, %s177
      %p184 = scmp.eq.s32.totalorder %s27, 1
      %p185 = por %p183, %p184
      %p186 = scmp.ne.s32.totalorder %s177, %s178
      %p187 = scmp.eq.s32.totalorder %s27, 0
      %p188 = por %p186, %p187
      %p189 = scmp.ne.s32.totalorder %s177, %s178
      %p190 = scmp.eq.s32.totalorder %s28, 1
      %p191 = por %p189, %p190
      %p193 = scmp.ne.s32.totalorder %s178, %s192
      %p194 = scmp.eq.s32.totalorder %s28, 0
      %p195 = por %p193, %p194
      %s197 = sadd.s32 %s196, 1
      %p200 = scmp.eq.s32.totalorder %s22, 1
      %p201 = scmp.ne.s32.totalorder %s196, %s198
      %p202 = scmp.eq.s32.totalorder %s22, 0
      %p203 = por %p201, %p202
      %p204 = scmp.ne.s32.totalorder %s196, %s198
      %p205 = scmp.eq.s32.totalorder %s27, 1
      %p206 = por %p204, %p205
      %p207 = scmp.ne.s32.totalorder %s198, %s199
      %p208 = scmp.eq.s32.totalorder %s27, 0
      %p209 = por %p207, %p208
      %p210 = scmp.ne.s32.totalorder %s198, %s199
      %p211 = scmp.eq.s32.totalorder %s28, 1
      %p212 = por %p210, %p211
      %p214 = scmp.ne.s32.totalorder %s199, %s213
      %p215 = scmp.eq.s32.totalorder %s28, 0
      %p216 = por %p214, %p215
      %s218 = sadd.s32 %s217, 1
      %p221 = scmp.eq.s32.totalorder %s22, 1
      %p222 = scmp.ne.s32.totalorder %s217, %s219
      %p223 = scmp.eq.s32.totalorder %s22, 0
      %p224 = por %p222, %p223
      %p225 = scmp.ne.s32.totalorder %s217, %s219
      %p226 = scmp.eq.s32.totalorder %s27, 1
      %p227 = por %p225, %p226
      %p228 = scmp.ne.s32.totalorder %s219, %s220
      %p229 = scmp.eq.s32.totalorder %s27, 0
      %p230 = por %p228, %p229
      %p231 = scmp.ne.s32.totalorder %s219, %s220
      %p232 = scmp.eq.s32.totalorder %s28, 1
      %p233 = por %p231, %p232
      %p235 = scmp.ne.s32.totalorder %s220, %s234
      %p236 = scmp.eq.s32.totalorder %s28, 0
      %p237 = por %p235, %p236
      %s239 = sadd.s32 %s238, 1
      %p242 = scmp.eq.s32.totalorder %s22, 1
      %p243 = scmp.ne.s32.totalorder %s238, %s240
      %p244 = scmp.eq.s32.totalorder %s22, 0
      %p245 = por %p243, %p244
      %p246 = scmp.ne.s32.totalorder %s238, %s240
      %p247 = scmp.eq.s32.totalorder %s27, 1
      %p248 = por %p246, %p247
      %p249 = scmp.ne.s32.totalorder %s240, %s241
      %p250 = scmp.eq.s32.totalorder %s27, 0
      %p251 = por %p249, %p250
      %p252 = scmp.ne.s32.totalorder %s240, %s241
      %p253 = scmp.eq.s32.totalorder %s28, 1
      %p254 = por %p252, %p253
      %p256 = scmp.ne.s32.totalorder %s241, %s255
      %p257 = scmp.eq.s32.totalorder %s28, 0
      %p258 = por %p256, %p257
      %s260 = sadd.s32 %s259, 1
      %p263 = scmp.eq.s32.totalorder %s22, 1
      %p264 = scmp.ne.s32.totalorder %s259, %s261
      %p265 = scmp.eq.s32.totalorder %s22, 0
      %p266 = por %p264, %p265
      %p267 = scmp.ne.s32.totalorder %s259, %s261
      %p268 = scmp.eq.s32.totalorder %s27, 1
      %p269 = por %p267, %p268
      %p270 = scmp.ne.s32.totalorder %s261, %s262
      %p271 = scmp.eq.s32.totalorder %s27, 0
      %p272 = por %p270, %p271
      %p273 = scmp.ne.s32.totalorder %s261, %s262
      %p274 = scmp.eq.s32.totalorder %s28, 1
      %p275 = por %p273, %p274
      %p277 = scmp.ne.s32.totalorder %s262, %s276
      %p278 = scmp.eq.s32.totalorder %s28, 0
      %p279 = por %p277, %p278
      %s281 = sadd.s32 %s280, 1
      %p284 = scmp.eq.s32.totalorder %s22, 1
      %p285 = scmp.ne.s32.totalorder %s280, %s282
      %p286 = scmp.eq.s32.totalorder %s22, 0
      %p287 = por %p285, %p286
      %p288 = scmp.ne.s32.totalorder %s280, %s282
      %p289 = scmp.eq.s32.totalorder %s27, 1
      %p290 = por %p288, %p289
      %p291 = scmp.ne.s32.totalorder %s282, %s283
      %p292 = scmp.eq.s32.totalorder %s27, 0
      %p293 = por %p291, %p292
      %p294 = scmp.ne.s32.totalorder %s282, %s283
      %p295 = scmp.eq.s32.totalorder %s28, 1
      %p296 = por %p294, %p295
      %p298 = scmp.ne.s32.totalorder %s283, %s297
      %p299 = scmp.eq.s32.totalorder %s28, 0
      %p300 = por %p298, %p299
      %s302 = sadd.s32 %s301, 1
      %p305 = scmp.eq.s32.totalorder %s22, 1
      %p306 = scmp.ne.s32.totalorder %s301, %s303
      %p307 = scmp.eq.s32.totalorder %s22, 0
      %p308 = por %p306, %p307
      %p309 = scmp.ne.s32.totalorder %s301, %s303
      %p310 = scmp.eq.s32.totalorder %s27, 1
      %p311 = por %p309, %p310
      %p312 = scmp.ne.s32.totalorder %s303, %s304
      %p313 = scmp.eq.s32.totalorder %s27, 0
      %p314 = por %p312, %p313
      %p315 = scmp.ne.s32.totalorder %s303, %s304
      %p316 = scmp.eq.s32.totalorder %s28, 1
      %p317 = por %p315, %p316
      %p319 = scmp.ne.s32.totalorder %s304, %s318
      %p320 = scmp.eq.s32.totalorder %s28, 0
      %p321 = por %p319, %p320
      %s322 = ssub.s32 %s29, %s41
      %s323 = ssub.s32 %s30, %s37
      %s324 = sor.u32 %s322, %s323
      %p325 = scmp.eq.s32.totalorder %s324, 0
      %s327 = sadd.s32 %s326, 1
      %s328 = scalar_select %p325, %s326, %s327
      %p331 = pneg %p325
      %p332 = scmp.eq.s32.totalorder %s22, 1
      %p333 = por %p331, %p332
      %p334 = scmp.ne.s32.totalorder %s326, %s329
      %p335 = scmp.eq.s32.totalorder %s22, 0
      %p336 = por %p334, %p335
      %p337 = scmp.ne.s32.totalorder %s326, %s329
      %p338 = scmp.eq.s32.totalorder %s27, 1
      %p339 = por %p337, %p338
      %p340 = scmp.ne.s32.totalorder %s329, %s330
      %p341 = scmp.eq.s32.totalorder %s27, 0
      %p342 = por %p340, %p341
      %p343 = scmp.ne.s32.totalorder %s329, %s330
      %p344 = scmp.eq.s32.totalorder %s28, 1
      %p345 = por %p343, %p344
      %p347 = scmp.ne.s32.totalorder %s330, %s346
      %p348 = scmp.eq.s32.totalorder %s28, 0
      %p349 = por %p347, %p348
      %p350 = scmp.le.s32.totalorder 1, %s22
      %p351 = scmp.lt.s32.totalorder %s22, 3
      %p352 = pnand %p350, %p351
      %p353 = pneg %p352
      // Predicated region
      $region9: #{tpu_custom_call.1} parent=5 // pred_check
        _
      $region10: #{tpu_custom_call.1} parent=5 // pred_check_branch
        %355 = sbr.rel (%p352) target = $region12
      $region11: #{tpu_custom_call.1} parent=5 // pred_region
        %s356 = ssub.s32 %s22, 1
        // Predicated region
        $region13: #{tpu_custom_call.1} parent=11 // pred_check
          %p357 = pneg %p83
        $region14: #{tpu_custom_call.1} parent=11 // pred_check_branch
          %359 = sbr.rel (%p357) target = $region16
        $region15: #{tpu_custom_call.1} parent=11 // pred_region
          _
        $region16: #{tpu_custom_call.1} parent=11 // pred_fallthru
          _
        // Predicated region
        $region17: #{tpu_custom_call.1} parent=11 // pred_check
          %p360 = pneg %p104
        $region18: #{tpu_custom_call.1} parent=11 // pred_check_branch
          %362 = sbr.rel (%p360) target = $region20
        $region19: #{tpu_custom_call.1} parent=11 // pred_region
          _
        $region20: #{tpu_custom_call.1} parent=11 // pred_fallthru
          _
        // Predicated region
        $region21: #{tpu_custom_call.1} parent=11 // pred_check
          %p363 = pneg %p125
        $region22: #{tpu_custom_call.1} parent=11 // pred_check_branch
          %365 = sbr.rel (%p363) target = $region24
        $region23: #{tpu_custom_call.1} parent=11 // pred_region
          _
        $region24: #{tpu_custom_call.1} parent=11 // pred_fallthru
          _
        // Predicated region
        $region25: #{tpu_custom_call.1} parent=11 // pred_check
          %p366 = pneg %p146
        $region26: #{tpu_custom_call.1} parent=11 // pred_check_branch
          %368 = sbr.rel (%p366) target = $region28
        $region27: #{tpu_custom_call.1} parent=11 // pred_region
          _
        $region28: #{tpu_custom_call.1} parent=11 // pred_fallthru
          _
        // Predicated region
        $region29: #{tpu_custom_call.1} parent=11 // pred_check
          %p369 = pneg %p167
        $region30: #{tpu_custom_call.1} parent=11 // pred_check_branch
          %371 = sbr.rel (%p369) target = $region32
        $region31: #{tpu_custom_call.1} parent=11 // pred_region
          _
        $region32: #{tpu_custom_call.1} parent=11 // pred_fallthru
          _
        // Predicated region
        $region33: #{tpu_custom_call.1} parent=11 // pred_check
          %p372 = pneg %p188
        $region34: #{tpu_custom_call.1} parent=11 // pred_check_branch
          %374 = sbr.rel (%p372) target = $region36
        $region35: #{tpu_custom_call.1} parent=11 // pred_region
          _
        $region36: #{tpu_custom_call.1} parent=11 // pred_fallthru
          _
        // Predicated region
        $region37: #{tpu_custom_call.1} parent=11 // pred_check
          %p375 = pneg %p209
        $region38: #{tpu_custom_call.1} parent=11 // pred_check_branch
          %377 = sbr.rel (%p375) target = $region40
        $region39: #{tpu_custom_call.1} parent=11 // pred_region
          _
        $region40: #{tpu_custom_call.1} parent=11 // pred_fallthru
          _
        // Predicated region
        $region41: #{tpu_custom_call.1} parent=11 // pred_check
          %p378 = pneg %p230
        $region42: #{tpu_custom_call.1} parent=11 // pred_check_branch
          %380 = sbr.rel (%p378) target = $region44
        $region43: #{tpu_custom_call.1} parent=11 // pred_region
          _
        $region44: #{tpu_custom_call.1} parent=11 // pred_fallthru
          _
        // Predicated region
        $region45: #{tpu_custom_call.1} parent=11 // pred_check
          %p381 = pneg %p251
        $region46: #{tpu_custom_call.1} parent=11 // pred_check_branch
          %383 = sbr.rel (%p381) target = $region48
        $region47: #{tpu_custom_call.1} parent=11 // pred_region
          _
        $region48: #{tpu_custom_call.1} parent=11 // pred_fallthru
          _
        // Predicated region
        $region49: #{tpu_custom_call.1} parent=11 // pred_check
          %p384 = pneg %p272
        $region50: #{tpu_custom_call.1} parent=11 // pred_check_branch
          %386 = sbr.rel (%p384) target = $region52
        $region51: #{tpu_custom_call.1} parent=11 // pred_region
          _
        $region52: #{tpu_custom_call.1} parent=11 // pred_fallthru
          _
        // Predicated region
        $region53: #{tpu_custom_call.1} parent=11 // pred_check
          %p387 = pneg %p293
        $region54: #{tpu_custom_call.1} parent=11 // pred_check_branch
          %389 = sbr.rel (%p387) target = $region56
        $region55: #{tpu_custom_call.1} parent=11 // pred_region
          _
        $region56: #{tpu_custom_call.1} parent=11 // pred_fallthru
          _
        // Predicated region
        $region57: #{tpu_custom_call.1} parent=11 // pred_check
          %p390 = pneg %p314
        $region58: #{tpu_custom_call.1} parent=11 // pred_check_branch
          %392 = sbr.rel (%p390) target = $region60
        $region59: #{tpu_custom_call.1} parent=11 // pred_region
          _
        $region60: #{tpu_custom_call.1} parent=11 // pred_fallthru
          _
      $region12: #{tpu_custom_call.1} parent=5 // pred_fallthru
        _
      %p393 = scmp.lt.s32.totalorder %s22, 2
      // Predicated region
      $region61: #{tpu_custom_call.1} parent=5 // pred_check
        %p394 = pneg %p393
      $region62: #{tpu_custom_call.1} parent=5 // pred_check_branch
        %396 = sbr.rel (%p394) target = $region64
      $region63: #{tpu_custom_call.1} parent=5 // pred_region
        // Predicated region
        $region65: #{tpu_custom_call.1} parent=63 // pred_check
          %p397 = pneg %p56
        $region66: #{tpu_custom_call.1} parent=63 // pred_check_branch
          %399 = sbr.rel (%p397) target = $region68
        $region67: #{tpu_custom_call.1} parent=63 // pred_region
          %p400 = scmp.lt.s32.totalorder %s29, 1
          %s401 = scalar_select %p400, %s29, 1
          %p402 = scmp.lt.s32.totalorder %s30, 0
          %s403 = scalar_select %p402, %s30, 0
          %s404 = sadd.s32 %s403, %s401
          %s405 = smul.addr %s404, 8
          %s406 = scalar_lea.vmem %s0, %s405
        $region68: #{tpu_custom_call.1} parent=63 // pred_fallthru
          _
      $region64: #{tpu_custom_call.1} parent=5 // pred_fallthru
        _
      %p407 = scmp.le.s32.totalorder 1, %s22
      %p408 = scmp.lt.s32.totalorder %s22, 3
      %p409 = pnand %p407, %p408
      %p410 = pneg %p409
      // Predicated region
      $region69: #{tpu_custom_call.1} parent=5 // pred_check
        _
      $region70: #{tpu_custom_call.1} parent=5 // pred_check_branch
        %412 = sbr.rel (%p409) target = $region72
      $region71: #{tpu_custom_call.1} parent=5 // pred_region
        %s413 = ssub.s32 %s22, 1
        %p414 = scmp.lt.s32.totalorder %s31, 1
        %s415 = scalar_select %p414, %s31, 1
        %p416 = scmp.lt.s32.totalorder %s32, 0
        %s417 = scalar_select %p416, %s32, 0
        %s418 = sadd.s32 %s417, %s415
        %s419 = smul.addr %s418, 8
        %s420 = scalar_lea.vmem %s0, %s419
        %p421 = pneg %p62
        %p422 = pneg %p59
        %p423 = pneg %p83
        %p424 = pneg %p80
        %p425 = pneg %p104
        %p426 = pneg %p101
        %p427 = pneg %p125
        %p428 = pneg %p122
        %p429 = pneg %p146
        %p430 = pneg %p143
        %p431 = pneg %p167
        %p432 = pneg %p164
        %p433 = pneg %p188
        %p434 = pneg %p185
        %p435 = pneg %p209
        %p436 = pneg %p206
        %p437 = pneg %p230
        %p438 = pneg %p227
        %p439 = pneg %p251
        %p440 = pneg %p248
        %p441 = pneg %p272
        %p442 = pneg %p269
        %p443 = pneg %p293
        %p444 = pneg %p290
        %p445 = pneg %p314
        %p446 = pneg %p311
        %p447 = pneg %p342
        %p448 = pneg %p339
        %s449 = sand.u32 %s329, 1
        %s450 = scalar_lea.sflag [#allocation5], %s449
        %s451 = sand.u32 %s329, 1
        %s452 = smul.addr %s451, 8
        %s453 = scalar_lea.vmem [#allocation4], %s452
        %p454 = scmp.lt.s32.totalorder %s31, 1
        %s455 = scalar_select %p454, %s31, 1
        %p456 = scmp.lt.s32.totalorder %s32, 0
        %s457 = scalar_select %p456, %s32, 0
        %s458 = sadd.s32 %s457, %s455
        %s459 = smul.addr %s458, 8
        %s460 = scalar_lea.vmem %s0, %s459
        %v462 = vld [vmem:[%s460] sm:$0xff]
        %s463 = smul.u32 %s32, 8
        %v464 = vld [vmem:[%s1] sm:$0x1]
        %v465 = vld [vmem:[%s2] sm:$0x1]
        %vm466 = vcmask 261120
        %v467 = vsel %vm466, %v462, 0.0
        %468 = vadd.xlane.f32.xlu0 %v467
        %v469 = vpop.xlane.xlu0 %468
        %v470 = vrcp.pop 32.0
        %v471 = vmul.f32 %v469, %v470
        %v472 = vsub.f32 %v462, %v471
        %v473 = vmul.f32 %v472, %v472
        %v474 = vsel %vm466, %v473, 0.0
        %475 = vadd.xlane.f32.xlu0 %v474
        %v476 = vpop.xlane.xlu0 %475
        %v477 = vmul.f32 %v476, %v470
        %v478 = vadd.f32 %v477, 1e-05
        %v479 = vrsqrt.pop %v478
        %v480 = vmul.f32 %v472, %v479
        %v482 = vlaneseq
        %v483 = vshrl.u32 %v482, 7
        %v484 = vsub.s32 0, %v483
        %v485 = vrot.slane %v464, %v484
        %v487 = vmul.f32 %v480, %v485
        %v489 = vlaneseq
        %v490 = vshrl.u32 %v489, 7
        %v491 = vsub.s32 0, %v490
        %v492 = vrot.slane %v465, %v491
        %v494 = vadd.f32 %v487, %v492
        %v495 = vpack.c.bf16 %v494, %v494
        %v496 = vld [vmem:[%s3] sm:$0xf]
        %v497 = vld [vmem:[%s3 + $0x4] sm:$0xf]
        %v498 = vld [vmem:[%s3 + $0x8] sm:$0xf]
        %v499 = vld [vmem:[%s3 + $0xc] sm:$0xf]
        %v500 = vld [vmem:[%s4] sm:$0x1]
        %v502 = vlaneseq
        %v503 = vshrl.u32 %v502, 7
        %v504 = vsub.s32 0, %v503
        %v505 = vrot.slane %v500, %v504
        %v511 = vunpack.c.l.b16 %v496
        %v512 = vunpack.c.l.b16 %v497
        %v513 = vunpack.c.l.b16 %v498
        %v514 = vunpack.c.l.b16 %v499
        %v515 = vpack.c.b16 %v512, %v511
        %v516 = vpack.c.b16 %v514, %v513
        %v520 = vsel %vm466, %v495, 0
        %522 = vmatprep.subr.bf16.mxu0 0
        %523 = vmatpush1.bf16.msra.mxu0 %v515
        %524 = vmatprep.subr.bf16.mxu0 0
        %525 = vmatpush1.bf16.msra.mxu0 %v516
        %526 = vmatprep.subr.bf16.mxu0 0
        %527 = vmatpush1.bf16.msra.mxu0 0
        %528 = vmatprep.subr.bf16.mxu0 0
        %529 = vmatpush1.bf16.msra.mxu0 0
        %530 = vmatprep.subr.bf16.mxu0 0
        %531 = vmatpush1.bf16.msra.mxu0 0
        %532 = vmatprep.subr.bf16.mxu0 0
        %533 = vmatpush1.bf16.msra.mxu0 0
        %534 = vmatprep.subr.bf16.mxu0 0
        %535 = vmatpush1.bf16.msra.mxu0 0
        %536 = vmatprep.subr.bf16.mxu0 0
        %537 = vmatpush1.bf16.msra.mxu0 0
        %538 = vmatprep.subr.bf16.mxu0 0
        %539 = vmatpush1.bf16.msra.mxu0 0
        %540 = vmatprep.subr.bf16.mxu0 0
        %541 = vmatpush1.bf16.msra.mxu0 0
        %542 = vmatprep.subr.bf16.mxu0 0
        %543 = vmatpush1.bf16.msra.mxu0 0
        %544 = vmatprep.subr.bf16.mxu0 0
        %545 = vmatpush1.bf16.msra.mxu0 0
        %546 = vmatprep.subr.bf16.mxu0 0
        %547 = vmatpush1.bf16.msra.mxu0 0
        %548 = vmatprep.subr.bf16.mxu0 0
        %549 = vmatpush1.bf16.msra.mxu0 0
        %550 = vmatprep.subr.bf16.mxu0 0
        %551 = vmatpush1.bf16.msra.mxu0 0
        %552 = vmatprep.subr.bf16.mxu0 0
        %553 = vmatpush1.bf16.msra.mxu0 0
        %554 = vmatprep.mubr.bf16.mxu0 0
        %555 = vmatmul.mubr.bf16.gmra.mrb[0].mxu0 %v520
        %v556 = vpop.f32.mrb[0].mxu0
        %v557 = vadd.f32 %v505, %v556
        %v558 = vpop.f32.mrb[0].mxu0
        %v559 = vpop.f32.mrb[0].mxu0
        %v560 = vpop.f32.mrb[0].mxu0
        %561 = vdwg.mxu0
        %v562 = vpack.c.bf16 %v557, %v557
        %v564 = vunpack.c.l.b16 %v562
        %v565 = vpack.c.b16 %v564, %v564
        %566 = vrot.lane.b32.xlu0 %v565, 96
        %v567 = vpop.permute.xlu0 %566
        %s569 = sshra.s32 %s463, 3
        %s570 = sand.u32 %s463, 7
        %s571 = smul.addr %s569, 4
        %s572 = scalar_lea.vmem [#allocation2], %s571
        %vm573 = vcmask 257024
        %574 = vst.msk [vmem:[%s572] sm:$0xf] %vm573, %v567
        %575 = vrot.lane.b32.xlu0 %v565, 64
        %v576 = vpop.permute.xlu0 %575
        %s578 = smul.addr %s569, 4
        %s579 = scalar_lea.vmem [#allocation3], %s578
        %580 = vst.msk [vmem:[%s579] sm:$0xf] %vm573, %v576
        %v581 = vlaneseq
        %v582 = vshrl.u32 %v581, 7
        %v583 = vlaneseq
        %v584 = vand.u32 %v583, 127
        %vm585 = vcmp.ge.s32.totalorder %v582, %v584
        %v586 = vsel %vm585, 0.0, -1e+30
        %s587 = sadd.s32 %s32, 1
        // While loop
        $region73: #{tpu_custom_call.1} parent=71 // loop_pre_header
          _
        $region74: #{tpu_custom_call.1} parent=71 // loop_header
          %s589 = sphi 0, %s591
          %p590 = scmp.ge.s32.totalorder %s589, %s587
          %v594 = vphi -1e+30, %v670
          %v595 = vphi -1e+30, %v788
          %v596 = vphi -1e+30, %v907
          %v597 = vphi -1e+30, %v1023
          %v598 = vphi 0.0, %v681
          %v599 = vphi 0.0, %v799
          %v600 = vphi 0.0, %v918
          %v601 = vphi 0.0, %v1034
          %v602 = vphi 0.0, %v731
          %v603 = vphi 0.0, %v853
          %v604 = vphi 0.0, %v969
          %v605 = vphi 0.0, %v1085
        $region75: #{tpu_custom_call.1} parent=71 // loop_header_branch
          %593 = sbr.rel (%p590) target = $region79
        $region76: #{tpu_custom_call.1} parent=71 // loop_body
          %s606 = smul.u32 %s589, 8
          %s607 = sshra.s32 %s606, 3
          %s608 = sand.u32 %s606, 7
          %s609 = smul.addr %s607, 4
          %s610 = scalar_lea.vmem [#allocation2], %s609
          %v611 = vld [vmem:[%s610] sm:$0xf]
          %s612 = smul.addr %s607, 4
          %s613 = scalar_lea.vmem [#allocation3], %s612
          %v614 = vld [vmem:[%s613] sm:$0xf]
          %p615 = scmp.eq.s32.totalorder %s589, %s32
          %s616 = scalar_select %p615, 1, 0
          %v617 = vstv %s616
          %vm618 = vcmp.eq.s32.totalorder %v617, 1
          %v619 = vsel %vm618, %v586, 0.0
          %vm620 = vcmask 64512
          %v622 = vsel %vm620, %v562, 0
          %v625 = vsel %vm620, %v611, 0
          %627 = vmatprep.subr.bf16.mxu0 0
          %628 = vmatpush1.bf16.xpose.msra.mxu0 %v625
          %629 = vmatprep.subr.bf16.mxu0 0
          %630 = vmatpush1.bf16.xpose.msra.mxu0 0
          %631 = vmatprep.subr.bf16.mxu0 0
          %632 = vmatpush1.bf16.xpose.msra.mxu0 0
          %633 = vmatprep.subr.bf16.mxu0 0
          %634 = vmatpush1.bf16.xpose.msra.mxu0 0
          %635 = vmatprep.subr.bf16.mxu0 0
          %636 = vmatpush1.bf16.xpose.msra.mxu0 0
          %637 = vmatprep.subr.bf16.mxu0 0
          %638 = vmatpush1.bf16.xpose.msra.mxu0 0
          %639 = vmatprep.subr.bf16.mxu0 0
          %640 = vmatpush1.bf16.xpose.msra.mxu0 0
          %641 = vmatprep.subr.bf16.mxu0 0
          %642 = vmatpush1.bf16.xpose.msra.mxu0 0
          %643 = vmatprep.subr.bf16.mxu0 0
          %644 = vmatpush1.bf16.xpose.msra.mxu0 0
          %645 = vmatprep.subr.bf16.mxu0 0
          %646 = vmatpush1.bf16.xpose.msra.mxu0 0
          %647 = vmatprep.subr.bf16.mxu0 0
          %648 = vmatpush1.bf16.xpose.msra.mxu0 0
          %649 = vmatprep.subr.bf16.mxu0 0
          %650 = vmatpush1.bf16.xpose.msra.mxu0 0
          %651 = vmatprep.subr.bf16.mxu0 0
          %652 = vmatpush1.bf16.xpose.msra.mxu0 0
          %653 = vmatprep.subr.bf16.mxu0 0
          %654 = vmatpush1.bf16.xpose.msra.mxu0 0
          %655 = vmatprep.subr.bf16.mxu0 0
          %656 = vmatpush1.bf16.xpose.msra.mxu0 0
          %657 = vmatprep.subr.bf16.mxu0 0
          %658 = vmatpush1.bf16.xpose.msra.mxu0 0
          %659 = vmatprep.mubr.bf16.mxu0 0
          %660 = vmatmul.mubr.bf16.gmra.mrb[0].mxu0 %v622
          %v661 = vpop.f32.mrb[0].mxu0
          %v662 = vadd.f32 %v619, %v661
          %v663 = vpop.f32.mrb[0].mxu0
          %v664 = vpop.f32.mrb[0].mxu0
          %v665 = vpop.f32.mrb[0].mxu0
          %666 = vdwg.mxu0
          %v667 = vsel %vm620, %v662, -inf
          %668 = vmax.xlane.f32.xlu0 %v667
          %v669 = vpop.xlane.xlu0 %668
          %v670 = vmax.f32 %v594, %v669
          %v671 = vsub.f32 %v594, %v670
          %v672 = vmul.f32 %v671, 1.442695
          %v673 = vpow.pop %v672
          %v674 = vsub.f32 %v662, %v670
          %v675 = vmul.f32 %v674, 1.442695
          %v676 = vpow.pop %v675
          %v677 = vmul.f32 %v673, %v598
          %v678 = vsel %vm620, %v676, 0.0
          %679 = vadd.xlane.f32.xlu0 %v678
          %v680 = vpop.xlane.xlu0 %679
          %v681 = vadd.f32 %v677, %v680
          %v682 = vmul.f32 %v673, %v602
          %v683 = vpack.c.bf16 %v676, %v676
          %v685 = vsel %vm620, %v683, 0
          %vm687 = vcmask 1043456
          %v689 = vsel %vm687, %v614, 0
          %691 = vmatprep.subr.bf16.mxu0 0
          %692 = vmatpush1.bf16.msra.mxu0 %v689
          %693 = vmatprep.subr.bf16.mxu0 0
          %694 = vmatpush1.bf16.msra.mxu0 0
          %695 = vmatprep.subr.bf16.mxu0 0
          %696 = vmatpush1.bf16.msra.mxu0 0
          %697 = vmatprep.subr.bf16.mxu0 0
          %698 = vmatpush1.bf16.msra.mxu0 0
          %699 = vmatprep.subr.bf16.mxu0 0
          %700 = vmatpush1.bf16.msra.mxu0 0
          %701 = vmatprep.subr.bf16.mxu0 0
          %702 = vmatpush1.bf16.msra.mxu0 0
          %703 = vmatprep.subr.bf16.mxu0 0
          %704 = vmatpush1.bf16.msra.mxu0 0
          %705 = vmatprep.subr.bf16.mxu0 0
          %706 = vmatpush1.bf16.msra.mxu0 0
          %707 = vmatprep.subr.bf16.mxu0 0
          %708 = vmatpush1.bf16.msra.mxu0 0
          %709 = vmatprep.subr.bf16.mxu0 0
          %710 = vmatpush1.bf16.msra.mxu0 0
          %711 = vmatprep.subr.bf16.mxu0 0
          %712 = vmatpush1.bf16.msra.mxu0 0
          %713 = vmatprep.subr.bf16.mxu0 0
          %714 = vmatpush1.bf16.msra.mxu0 0
          %715 = vmatprep.subr.bf16.mxu0 0
          %716 = vmatpush1.bf16.msra.mxu0 0
          %717 = vmatprep.subr.bf16.mxu0 0
          %718 = vmatpush1.bf16.msra.mxu0 0
          %719 = vmatprep.subr.bf16.mxu0 0
          %720 = vmatpush1.bf16.msra.mxu0 0
          %721 = vmatprep.subr.bf16.mxu0 0
          %722 = vmatpush1.bf16.msra.mxu0 0
          %723 = vmatprep.mubr.bf16.mxu0 0
          %724 = vmatmul.mubr.bf16.gmra.mrb[0].mxu0 %v685
          %v725 = vpop.f32.mrb[0].mxu0
          %v726 = vadd.f32 0.0, %v725
          %v727 = vpop.f32.mrb[0].mxu0
          %v728 = vpop.f32.mrb[0].mxu0
          %v729 = vpop.f32.mrb[0].mxu0
          %730 = vdwg.mxu0
          %v731 = vadd.f32 %v682, %v726
          %732 = vrot.lane.b32.xlu0 %v562, 120
          %v733 = vpop.permute.xlu0 %732
          %v735 = vunpack.c.l.b16 %v611
          %v736 = vpack.c.b16 %v735, %v735
          %737 = vrot.lane.b32.xlu0 %v736, 120
          %v738 = vpop.permute.xlu0 %737
          %v740 = vsel %vm620, %v733, 0
          %v743 = vsel %vm620, %v738, 0
          %745 = vmatprep.subr.bf16.mxu0 0
          %746 = vmatpush1.bf16.xpose.msra.mxu0 %v743
          %747 = vmatprep.subr.bf16.mxu0 0
          %748 = vmatpush1.bf16.xpose.msra.mxu0 0
          %749 = vmatprep.subr.bf16.mxu0 0
          %750 = vmatpush1.bf16.xpose.msra.mxu0 0
          %751 = vmatprep.subr.bf16.mxu0 0
          %752 = vmatpush1.bf16.xpose.msra.mxu0 0
          %753 = vmatprep.subr.bf16.mxu0 0
          %754 = vmatpush1.bf16.xpose.msra.mxu0 0
          %755 = vmatprep.subr.bf16.mxu0 0
          %756 = vmatpush1.bf16.xpose.msra.mxu0 0
          %757 = vmatprep.subr.bf16.mxu0 0
          %758 = vmatpush1.bf16.xpose.msra.mxu0 0
          %759 = vmatprep.subr.bf16.mxu0 0
          %760 = vmatpush1.bf16.xpose.msra.mxu0 0
          %761 = vmatprep.subr.bf16.mxu0 0
          %762 = vmatpush1.bf16.xpose.msra.mxu0 0
          %763 = vmatprep.subr.bf16.mxu0 0
          %764 = vmatpush1.bf16.xpose.msra.mxu0 0
          %765 = vmatprep.subr.bf16.mxu0 0
          %766 = vmatpush1.bf16.xpose.msra.mxu0 0
          %767 = vmatprep.subr.bf16.mxu0 0
          %768 = vmatpush1.bf16.xpose.msra.mxu0 0
          %769 = vmatprep.subr.bf16.mxu0 0
          %770 = vmatpush1.bf16.xpose.msra.mxu0 0
          %771 = vmatprep.subr.bf16.mxu0 0
          %772 = vmatpush1.bf16.xpose.msra.mxu0 0
          %773 = vmatprep.subr.bf16.mxu0 0
          %774 = vmatpush1.bf16.xpose.msra.mxu0 0
          %775 = vmatprep.subr.bf16.mxu0 0
          %776 = vmatpush1.bf16.xpose.msra.mxu0 0
          %777 = vmatprep.mubr.bf16.mxu0 0
          %778 = vmatmul.mubr.bf16.gmra.mrb[0].mxu0 %v740
          %v779 = vpop.f32.mrb[0].mxu0
          %v780 = vadd.f32 %v619, %v779
          %v781 = vpop.f32.mrb[0].mxu0
          %v782 = vpop.f32.mrb[0].mxu0
          %v783 = vpop.f32.mrb[0].mxu0
          %784 = vdwg.mxu0
          %v785 = vsel %vm620, %v780, -inf
          %786 = vmax.xlane.f32.xlu0 %v785
          %v787 = vpop.xlane.xlu0 %786
          %v788 = vmax.f32 %v595, %v787
          %v789 = vsub.f32 %v595, %v788
          %v790 = vmul.f32 %v789, 1.442695
          %v791 = vpow.pop %v790
          %v792 = vsub.f32 %v780, %v788
          %v793 = vmul.f32 %v792, 1.442695
          %v794 = vpow.pop %v793
          %v795 = vmul.f32 %v791, %v599
          %v796 = vsel %vm620, %v794, 0.0
          %797 = vadd.xlane.f32.xlu0 %v796
          %v798 = vpop.xlane.xlu0 %797
          %v799 = vadd.f32 %v795, %v798
          %v800 = vmul.f32 %v791, %v603
          %v801 = vpack.c.bf16 %v794, %v794
          %v803 = vunpack.c.l.b16 %v614
          %v804 = vpack.c.b16 %v803, %v803
          %805 = vrot.lane.b32.xlu0 %v804, 120
          %v806 = vpop.permute.xlu0 %805
          %v808 = vsel %vm620, %v801, 0
          %v811 = vsel %vm687, %v806, 0
          %813 = vmatprep.subr.bf16.mxu0 0
          %814 = vmatpush1.bf16.msra.mxu0 %v811
          %815 = vmatprep.subr.bf16.mxu0 0
          %816 = vmatpush1.bf16.msra.mxu0 0
          %817 = vmatprep.subr.bf16.mxu0 0
          %818 = vmatpush1.bf16.msra.mxu0 0
          %819 = vmatprep.subr.bf16.mxu0 0
          %820 = vmatpush1.bf16.msra.mxu0 0
          %821 = vmatprep.subr.bf16.mxu0 0
          %822 = vmatpush1.bf16.msra.mxu0 0
          %823 = vmatprep.subr.bf16.mxu0 0
          %824 = vmatpush1.bf16.msra.mxu0 0
          %825 = vmatprep.subr.bf16.mxu0 0
          %826 = vmatpush1.bf16.msra.mxu0 0
          %827 = vmatprep.subr.bf16.mxu0 0
          %828 = vmatpush1.bf16.msra.mxu0 0
          %829 = vmatprep.subr.bf16.mxu0 0
          %830 = vmatpush1.bf16.msra.mxu0 0
          %831 = vmatprep.subr.bf16.mxu0 0
          %832 = vmatpush1.bf16.msra.mxu0 0
          %833 = vmatprep.subr.bf16.mxu0 0
          %834 = vmatpush1.bf16.msra.mxu0 0
          %835 = vmatprep.subr.bf16.mxu0 0
          %836 = vmatpush1.bf16.msra.mxu0 0
          %837 = vmatprep.subr.bf16.mxu0 0
          %838 = vmatpush1.bf16.msra.mxu0 0
          %839 = vmatprep.subr.bf16.mxu0 0
          %840 = vmatpush1.bf16.msra.mxu0 0
          %841 = vmatprep.subr.bf16.mxu0 0
          %842 = vmatpush1.bf16.msra.mxu0 0
          %843 = vmatprep.subr.bf16.mxu0 0
          %844 = vmatpush1.bf16.msra.mxu0 0
          %845 = vmatprep.mubr.bf16.mxu0 0
          %846 = vmatmul.mubr.bf16.gmra.mrb[0].mxu0 %v808
          %v847 = vpop.f32.mrb[0].mxu0
          %v848 = vadd.f32 0.0, %v847
          %v849 = vpop.f32.mrb[0].mxu0
          %v850 = vpop.f32.mrb[0].mxu0
          %v851 = vpop.f32.mrb[0].mxu0
          %852 = vdwg.mxu0
          %v853 = vadd.f32 %v800, %v848
          %854 = vrot.lane.b32.xlu0 %v562, 112
          %v855 = vpop.permute.xlu0 %854
          %856 = vrot.lane.b32.xlu0 %v736, 112
          %v857 = vpop.permute.xlu0 %856
          %v859 = vsel %vm620, %v855, 0
          %v862 = vsel %vm620, %v857, 0
          %864 = vmatprep.subr.bf16.mxu0 0
          %865 = vmatpush1.bf16.xpose.msra.mxu0 %v862
          %866 = vmatprep.subr.bf16.mxu0 0
          %867 = vmatpush1.bf16.xpose.msra.mxu0 0
          %868 = vmatprep.subr.bf16.mxu0 0
          %869 = vmatpush1.bf16.xpose.msra.mxu0 0
          %870 = vmatprep.subr.bf16.mxu0 0
          %871 = vmatpush1.bf16.xpose.msra.mxu0 0
          %872 = vmatprep.subr.bf16.mxu0 0
          %873 = vmatpush1.bf16.xpose.msra.mxu0 0
          %874 = vmatprep.subr.bf16.mxu0 0
          %875 = vmatpush1.bf16.xpose.msra.mxu0 0
          %876 = vmatprep.subr.bf16.mxu0 0
          %877 = vmatpush1.bf16.xpose.msra.mxu0 0
          %878 = vmatprep.subr.bf16.mxu0 0
          %879 = vmatpush1.bf16.xpose.msra.mxu0 0
          %880 = vmatprep.subr.bf16.mxu0 0
          %881 = vmatpush1.bf16.xpose.msra.mxu0 0
          %882 = vmatprep.subr.bf16.mxu0 0
          %883 = vmatpush1.bf16.xpose.msra.mxu0 0
          %884 = vmatprep.subr.bf16.mxu0 0
          %885 = vmatpush1.bf16.xpose.msra.mxu0 0
          %886 = vmatprep.subr.bf16.mxu0 0
          %887 = vmatpush1.bf16.xpose.msra.mxu0 0
          %888 = vmatprep.subr.bf16.mxu0 0
          %889 = vmatpush1.bf16.xpose.msra.mxu0 0
          %890 = vmatprep.subr.bf16.mxu0 0
          %891 = vmatpush1.bf16.xpose.msra.mxu0 0
          %892 = vmatprep.subr.bf16.mxu0 0
          %893 = vmatpush1.bf16.xpose.msra.mxu0 0
          %894 = vmatprep.subr.bf16.mxu0 0
          %895 = vmatpush1.bf16.xpose.msra.mxu0 0
          %896 = vmatprep.mubr.bf16.mxu0 0
          %897 = vmatmul.mubr.bf16.gmra.mrb[0].mxu0 %v859
          %v898 = vpop.f32.mrb[0].mxu0
          %v899 = vadd.f32 %v619, %v898
          %v900 = vpop.f32.mrb[0].mxu0
          %v901 = vpop.f32.mrb[0].mxu0
          %v902 = vpop.f32.mrb[0].mxu0
          %903 = vdwg.mxu0
          %v904 = vsel %vm620, %v899, -inf
          %905 = vmax.xlane.f32.xlu0 %v904
          %v906 = vpop.xlane.xlu0 %905
          %v907 = vmax.f32 %v596, %v906
          %v908 = vsub.f32 %v596, %v907
          %v909 = vmul.f32 %v908, 1.442695
          %v910 = vpow.pop %v909
          %v911 = vsub.f32 %v899, %v907
          %v912 = vmul.f32 %v911, 1.442695
          %v913 = vpow.pop %v912
          %v914 = vmul.f32 %v910, %v600
          %v915 = vsel %vm620, %v913, 0.0
          %916 = vadd.xlane.f32.xlu0 %v915
          %v917 = vpop.xlane.xlu0 %916
          %v918 = vadd.f32 %v914, %v917
          %v919 = vmul.f32 %v910, %v604
          %v920 = vpack.c.bf16 %v913, %v913
          %921 = vrot.lane.b32.xlu0 %v804, 112
          %v922 = vpop.permute.xlu0 %921
          %v924 = vsel %vm620, %v920, 0
          %v927 = vsel %vm687, %v922, 0
          %929 = vmatprep.subr.bf16.mxu0 0
          %930 = vmatpush1.bf16.msra.mxu0 %v927
          %931 = vmatprep.subr.bf16.mxu0 0
          %932 = vmatpush1.bf16.msra.mxu0 0
          %933 = vmatprep.subr.bf16.mxu0 0
          %934 = vmatpush1.bf16.msra.mxu0 0
          %935 = vmatprep.subr.bf16.mxu0 0
          %936 = vmatpush1.bf16.msra.mxu0 0
          %937 = vmatprep.subr.bf16.mxu0 0
          %938 = vmatpush1.bf16.msra.mxu0 0
          %939 = vmatprep.subr.bf16.mxu0 0
          %940 = vmatpush1.bf16.msra.mxu0 0
          %941 = vmatprep.subr.bf16.mxu0 0
          %942 = vmatpush1.bf16.msra.mxu0 0
          %943 = vmatprep.subr.bf16.mxu0 0
          %944 = vmatpush1.bf16.msra.mxu0 0
          %945 = vmatprep.subr.bf16.mxu0 0
          %946 = vmatpush1.bf16.msra.mxu0 0
          %947 = vmatprep.subr.bf16.mxu0 0
          %948 = vmatpush1.bf16.msra.mxu0 0
          %949 = vmatprep.subr.bf16.mxu0 0
          %950 = vmatpush1.bf16.msra.mxu0 0
          %951 = vmatprep.subr.bf16.mxu0 0
          %952 = vmatpush1.bf16.msra.mxu0 0
          %953 = vmatprep.subr.bf16.mxu0 0
          %954 = vmatpush1.bf16.msra.mxu0 0
          %955 = vmatprep.subr.bf16.mxu0 0
          %956 = vmatpush1.bf16.msra.mxu0 0
          %957 = vmatprep.subr.bf16.mxu0 0
          %958 = vmatpush1.bf16.msra.mxu0 0
          %959 = vmatprep.subr.bf16.mxu0 0
          %960 = vmatpush1.bf16.msra.mxu0 0
          %961 = vmatprep.mubr.bf16.mxu0 0
          %962 = vmatmul.mubr.bf16.gmra.mrb[0].mxu0 %v924
          %v963 = vpop.f32.mrb[0].mxu0
          %v964 = vadd.f32 0.0, %v963
          %v965 = vpop.f32.mrb[0].mxu0
          %v966 = vpop.f32.mrb[0].mxu0
          %v967 = vpop.f32.mrb[0].mxu0
          %968 = vdwg.mxu0
          %v969 = vadd.f32 %v919, %v964
          %970 = vrot.lane.b32.xlu0 %v562, 104
          %v971 = vpop.permute.xlu0 %970
          %972 = vrot.lane.b32.xlu0 %v736, 104
          %v973 = vpop.permute.xlu0 %972
          %v975 = vsel %vm620, %v971, 0
          %v978 = vsel %vm620, %v973, 0
          %980 = vmatprep.subr.bf16.mxu0 0
          %981 = vmatpush1.bf16.xpose.msra.mxu0 %v978
          %982 = vmatprep.subr.bf16.mxu0 0
          %983 = vmatpush1.bf16.xpose.msra.mxu0 0
          %984 = vmatprep.subr.bf16.mxu0 0
          %985 = vmatpush1.bf16.xpose.msra.mxu0 0
          %986 = vmatprep.subr.bf16.mxu0 0
          %987 = vmatpush1.bf16.xpose.msra.mxu0 0
          %988 = vmatprep.subr.bf16.mxu0 0
          %989 = vmatpush1.bf16.xpose.msra.mxu0 0
          %990 = vmatprep.subr.bf16.mxu0 0
          %991 = vmatpush1.bf16.xpose.msra.mxu0 0
          %992 = vmatprep.subr.bf16.mxu0 0
          %993 = vmatpush1.bf16.xpose.msra.mxu0 0
          %994 = vmatprep.subr.bf16.mxu0 0
          %995 = vmatpush1.bf16.xpose.msra.mxu0 0
          %996 = vmatprep.subr.bf16.mxu0 0
          %997 = vmatpush1.bf16.xpose.msra.mxu0 0
          %998 = vmatprep.subr.bf16.mxu0 0
          %999 = vmatpush1.bf16.xpose.msra.mxu0 0
          %1000 = vmatprep.subr.bf16.mxu0 0
          %1001 = vmatpush1.bf16.xpose.msra.mxu0 0
          %1002 = vmatprep.subr.bf16.mxu0 0
          %1003 = vmatpush1.bf16.xpose.msra.mxu0 0
          %1004 = vmatprep.subr.bf16.mxu0 0
          %1005 = vmatpush1.bf16.xpose.msra.mxu0 0
          %1006 = vmatprep.subr.bf16.mxu0 0
          %1007 = vmatpush1.bf16.xpose.msra.mxu0 0
          %1008 = vmatprep.subr.bf16.mxu0 0
          %1009 = vmatpush1.bf16.xpose.msra.mxu0 0
          %1010 = vmatprep.subr.bf16.mxu0 0
          %1011 = vmatpush1.bf16.xpose.msra.mxu0 0
          %1012 = vmatprep.mubr.bf16.mxu0 0
          %1013 = vmatmul.mubr.bf16.gmra.mrb[0].mxu0 %v975
          %v1014 = vpop.f32.mrb[0].mxu0
          %v1015 = vadd.f32 %v619, %v1014
          %v1016 = vpop.f32.mrb[0].mxu0
          %v1017 = vpop.f32.mrb[0].mxu0
          %v1018 = vpop.f32.mrb[0].mxu0
          %1019 = vdwg.mxu0
          %v1020 = vsel %vm620, %v1015, -inf
          %1021 = vmax.xlane.f32.xlu0 %v1020
          %v1022 = vpop.xlane.xlu0 %1021
          %v1023 = vmax.f32 %v597, %v1022
          %v1024 = vsub.f32 %v597, %v1023
          %v1025 = vmul.f32 %v1024, 1.442695
          %v1026 = vpow.pop %v1025
          %v1027 = vsub.f32 %v1015, %v1023
          %v1028 = vmul.f32 %v1027, 1.442695
          %v1029 = vpow.pop %v1028
          %v1030 = vmul.f32 %v1026, %v601
          %v1031 = vsel %vm620, %v1029, 0.0
          %1032 = vadd.xlane.f32.xlu0 %v1031
          %v1033 = vpop.xlane.xlu0 %1032
          %v1034 = vadd.f32 %v1030, %v1033
          %v1035 = vmul.f32 %v1026, %v605
          %v1036 = vpack.c.bf16 %v1029, %v1029
          %1037 = vrot.lane.b32.xlu0 %v804, 104
          %v1038 = vpop.permute.xlu0 %1037
          %v1040 = vsel %vm620, %v1036, 0
          %v1043 = vsel %vm687, %v1038, 0
          %1045 = vmatprep.subr.bf16.mxu0 0
          %1046 = vmatpush1.bf16.msra.mxu0 %v1043
          %1047 = vmatprep.subr.bf16.mxu0 0
          %1048 = vmatpush1.bf16.msra.mxu0 0
          %1049 = vmatprep.subr.bf16.mxu0 0
          %1050 = vmatpush1.bf16.msra.mxu0 0
          %1051 = vmatprep.subr.bf16.mxu0 0
          %1052 = vmatpush1.bf16.msra.mxu0 0
          %1053 = vmatprep.subr.bf16.mxu0 0
          %1054 = vmatpush1.bf16.msra.mxu0 0
          %1055 = vmatprep.subr.bf16.mxu0 0
          %1056 = vmatpush1.bf16.msra.mxu0 0
          %1057 = vmatprep.subr.bf16.mxu0 0
          %1058 = vmatpush1.bf16.msra.mxu0 0
          %1059 = vmatprep.subr.bf16.mxu0 0
          %1060 = vmatpush1.bf16.msra.mxu0 0
          %1061 = vmatprep.subr.bf16.mxu0 0
          %1062 = vmatpush1.bf16.msra.mxu0 0
          %1063 = vmatprep.subr.bf16.mxu0 0
          %1064 = vmatpush1.bf16.msra.mxu0 0
          %1065 = vmatprep.subr.bf16.mxu0 0
          %1066 = vmatpush1.bf16.msra.mxu0 0
          %1067 = vmatprep.subr.bf16.mxu0 0
          %1068 = vmatpush1.bf16.msra.mxu0 0
          %1069 = vmatprep.subr.bf16.mxu0 0
          %1070 = vmatpush1.bf16.msra.mxu0 0
          %1071 = vmatprep.subr.bf16.mxu0 0
          %1072 = vmatpush1.bf16.msra.mxu0 0
          %1073 = vmatprep.subr.bf16.mxu0 0
          %1074 = vmatpush1.bf16.msra.mxu0 0
          %1075 = vmatprep.subr.bf16.mxu0 0
          %1076 = vmatpush1.bf16.msra.mxu0 0
          %1077 = vmatprep.mubr.bf16.mxu0 0
          %1078 = vmatmul.mubr.bf16.gmra.mrb[0].mxu0 %v1040
          %v1079 = vpop.f32.mrb[0].mxu0
          %v1080 = vadd.f32 0.0, %v1079
          %v1081 = vpop.f32.mrb[0].mxu0
          %v1082 = vpop.f32.mrb[0].mxu0
          %v1083 = vpop.f32.mrb[0].mxu0
          %1084 = vdwg.mxu0
          %v1085 = vadd.f32 %v1035, %v1080
        $region77: #{tpu_custom_call.1} parent=71 // loop_footer
          %s591 = sadd.s32 %s589, 1
        $region78: #{tpu_custom_call.1} parent=71 // loop_footer_branch
          %588 = sbr.rel target = $region74
        $region79: #{tpu_custom_call.1} parent=71 // loop_exit
          _
        %v1086 = vrcp.pop %v598
        %v1087 = vmul.f32 %v602, %v1086
        %v1088 = vpack.c.bf16 %v1087, %v1087
        %v1089 = vrcp.pop %v599
        %v1090 = vmul.f32 %v603, %v1089
        %v1091 = vpack.c.bf16 %v1090, %v1090
        %v1092 = vrcp.pop %v600
        %v1093 = vmul.f32 %v604, %v1092
        %v1094 = vpack.c.bf16 %v1093, %v1093
        %v1095 = vrcp.pop %v601
        %v1096 = vmul.f32 %v605, %v1095
        %v1097 = vpack.c.bf16 %v1096, %v1096
        %1099 = vrot.lane.b32.xlu0 %v1091, 8
        %v1100 = vpop.permute.xlu0 %1099
        %1102 = vrot.lane.b32.xlu0 %v1094, 16
        %v1103 = vpop.permute.xlu0 %1102
        %1105 = vrot.lane.b32.xlu0 %v1097, 24
        %v1106 = vpop.permute.xlu0 %1105
        %vm1107 = vcmask 64512
        %v1110 = vsel %vm1107, %v1088, %v1100
        %vm1111 = vcmask 130048
        %v1113 = vsel %vm1111, %v1110, %v1103
        %vm1114 = vcmask 195584
        %v1116 = vsel %vm1114, %v1113, %v1106
        %v1117 = vld [vmem:[%s5] sm:$0xf]
        %v1118 = vld [vmem:[%s5 + $0x4] sm:$0xf]
        %v1119 = vld [vmem:[%s5 + $0x8] sm:$0xf]
        %v1120 = vld [vmem:[%s5 + $0xc] sm:$0xf]
        %v1121 = vld [vmem:[%s6] sm:$0x1]
        %v1123 = vlaneseq
        %v1124 = vshrl.u32 %v1123, 7
        %v1125 = vsub.s32 0, %v1124
        %v1126 = vrot.slane %v1121, %v1125
        %v1132 = vunpack.c.l.b16 %v1117
        %v1133 = vunpack.c.l.b16 %v1118
        %v1134 = vunpack.c.l.b16 %v1119
        %v1135 = vunpack.c.l.b16 %v1120
        %v1136 = vpack.c.b16 %v1133, %v1132
        %v1137 = vpack.c.b16 %v1135, %v1134
        %v1140 = vsel %vm466, %v1116, 0
        %1142 = vmatprep.subr.bf16.mxu0 0
        %1143 = vmatpush1.bf16.msra.mxu0 %v1136
        %1144 = vmatprep.subr.bf16.mxu0 0
        %1145 = vmatpush1.bf16.msra.mxu0 %v1137
        %1146 = vmatprep.subr.bf16.mxu0 0
        %1147 = vmatpush1.bf16.msra.mxu0 0
        %1148 = vmatprep.subr.bf16.mxu0 0
        %1149 = vmatpush1.bf16.msra.mxu0 0
        %1150 = vmatprep.subr.bf16.mxu0 0
        %1151 = vmatpush1.bf16.msra.mxu0 0
        %1152 = vmatprep.subr.bf16.mxu0 0
        %1153 = vmatpush1.bf16.msra.mxu0 0
        %1154 = vmatprep.subr.bf16.mxu0 0
        %1155 = vmatpush1.bf16.msra.mxu0 0
        %1156 = vmatprep.subr.bf16.mxu0 0
        %1157 = vmatpush1.bf16.msra.mxu0 0
        %1158 = vmatprep.subr.bf16.mxu0 0
        %1159 = vmatpush1.bf16.msra.mxu0 0
        %1160 = vmatprep.subr.bf16.mxu0 0
        %1161 = vmatpush1.bf16.msra.mxu0 0
        %1162 = vmatprep.subr.bf16.mxu0 0
        %1163 = vmatpush1.bf16.msra.mxu0 0
        %1164 = vmatprep.subr.bf16.mxu0 0
        %1165 = vmatpush1.bf16.msra.mxu0 0
        %1166 = vmatprep.subr.bf16.mxu0 0
        %1167 = vmatpush1.bf16.msra.mxu0 0
        %1168 = vmatprep.subr.bf16.mxu0 0
        %1169 = vmatpush1.bf16.msra.mxu0 0
        %1170 = vmatprep.subr.bf16.mxu0 0
        %1171 = vmatpush1.bf16.msra.mxu0 0
        %1172 = vmatprep.subr.bf16.mxu0 0
        %1173 = vmatpush1.bf16.msra.mxu0 0
        %1174 = vmatprep.mubr.bf16.mxu0 0
        %1175 = vmatmul.mubr.bf16.gmra.mrb[0].mxu0 %v1140
        %v1176 = vpop.f32.mrb[0].mxu0
        %v1177 = vadd.f32 %v1126, %v1176
        %v1178 = vpop.f32.mrb[0].mxu0
        %v1179 = vpop.f32.mrb[0].mxu0
        %v1180 = vpop.f32.mrb[0].mxu0
        %1181 = vdwg.mxu0
        %v1182 = vadd.f32 %v462, %v1177
        %v1183 = vld [vmem:[%s7] sm:$0x1]
        %v1184 = vld [vmem:[%s8] sm:$0x1]
        %v1185 = vsel %vm466, %v1182, 0.0
        %1186 = vadd.xlane.f32.xlu0 %v1185
        %v1187 = vpop.xlane.xlu0 %1186
        %v1188 = vmul.f32 %v1187, %v470
        %v1189 = vsub.f32 %v1182, %v1188
        %v1190 = vmul.f32 %v1189, %v1189
        %v1191 = vsel %vm466, %v1190, 0.0
        %1192 = vadd.xlane.f32.xlu0 %v1191
        %v1193 = vpop.xlane.xlu0 %1192
        %v1194 = vmul.f32 %v1193, %v470
        %v1195 = vadd.f32 %v1194, 1e-05
        %v1196 = vrsqrt.pop %v1195
        %v1197 = vmul.f32 %v1189, %v1196
        %v1199 = vlaneseq
        %v1200 = vshrl.u32 %v1199, 7
        %v1201 = vsub.s32 0, %v1200
        %v1202 = vrot.slane %v1183, %v1201
        %v1204 = vmul.f32 %v1197, %v1202
        %v1206 = vlaneseq
        %v1207 = vshrl.u32 %v1206, 7
        %v1208 = vsub.s32 0, %v1207
        %v1209 = vrot.slane %v1184, %v1208
        %v1211 = vadd.f32 %v1204, %v1209
        %v1212 = vpack.c.bf16 %v1211, %v1211
        %v1213 = vld [vmem:[%s9] sm:$0xf]
        %v1214 = vld [vmem:[%s9 + $0x4] sm:$0xf]
        %v1215 = vld [vmem:[%s9 + $0x8] sm:$0xf]
        %v1216 = vld [vmem:[%s9 + $0xc] sm:$0xf]
        %v1217 = vld [vmem:[%s10] sm:$0x1]
        %v1219 = vlaneseq
        %v1220 = vshrl.u32 %v1219, 7
        %v1221 = vsub.s32 0, %v1220
        %v1222 = vrot.slane %v1217, %v1221
        %v1228 = vunpack.c.l.b16 %v1213
        %v1229 = vunpack.c.l.b16 %v1214
        %v1230 = vunpack.c.l.b16 %v1215
        %v1231 = vunpack.c.l.b16 %v1216
        %v1232 = vpack.c.b16 %v1229, %v1228
        %v1233 = vpack.c.b16 %v1231, %v1230
        %v1237 = vsel %vm466, %v1212, 0
        %1239 = vmatprep.subr.bf16.mxu0 0
        %1240 = vmatpush1.bf16.msra.mxu0 %v1232
        %1241 = vmatprep.subr.bf16.mxu0 0
        %1242 = vmatpush1.bf16.msra.mxu0 %v1233
        %1243 = vmatprep.subr.bf16.mxu0 0
        %1244 = vmatpush1.bf16.msra.mxu0 0
        %1245 = vmatprep.subr.bf16.mxu0 0
        %1246 = vmatpush1.bf16.msra.mxu0 0
        %1247 = vmatprep.subr.bf16.mxu0 0
        %1248 = vmatpush1.bf16.msra.mxu0 0
        %1249 = vmatprep.subr.bf16.mxu0 0
        %1250 = vmatpush1.bf16.msra.mxu0 0
        %1251 = vmatprep.subr.bf16.mxu0 0
        %1252 = vmatpush1.bf16.msra.mxu0 0
        %1253 = vmatprep.subr.bf16.mxu0 0
        %1254 = vmatpush1.bf16.msra.mxu0 0
        %1255 = vmatprep.subr.bf16.mxu0 0
        %1256 = vmatpush1.bf16.msra.mxu0 0
        %1257 = vmatprep.subr.bf16.mxu0 0
        %1258 = vmatpush1.bf16.msra.mxu0 0
        %1259 = vmatprep.subr.bf16.mxu0 0
        %1260 = vmatpush1.bf16.msra.mxu0 0
        %1261 = vmatprep.subr.bf16.mxu0 0
        %1262 = vmatpush1.bf16.msra.mxu0 0
        %1263 = vmatprep.subr.bf16.mxu0 0
        %1264 = vmatpush1.bf16.msra.mxu0 0
        %1265 = vmatprep.subr.bf16.mxu0 0
        %1266 = vmatpush1.bf16.msra.mxu0 0
        %1267 = vmatprep.subr.bf16.mxu0 0
        %1268 = vmatpush1.bf16.msra.mxu0 0
        %1269 = vmatprep.subr.bf16.mxu0 0
        %1270 = vmatpush1.bf16.msra.mxu0 0
        %1271 = vmatprep.mubr.bf16.mxu0 0
        %1272 = vmatmul.mubr.bf16.gmra.mrb[0].mxu0 %v1237
        %v1273 = vpop.f32.mrb[0].mxu0
        %v1274 = vadd.f32 %v1222, %v1273
        %v1275 = vpop.f32.mrb[0].mxu0
        %v1276 = vpop.f32.mrb[0].mxu0
        %v1277 = vpop.f32.mrb[0].mxu0
        %1278 = vdwg.mxu0
        %v1279 = vmul.f32 %v1274, 0.5
        %v1280 = vmul.f32 %v1274, 0.044715
        %v1281 = vmul.f32 %v1280, %v1274
        %v1282 = vmul.f32 %v1281, %v1274
        %v1283 = vadd.f32 %v1274, %v1282
        %v1284 = vmul.f32 %v1283, 0.7978846
        %v1285 = vtanh.pop %v1284
        %v1286 = vadd.f32 %v1285, 1.0
        %v1287 = vmul.f32 %v1279, %v1286
        %v1288 = vpack.c.bf16 %v1287, %v1287
        %v1289 = vld [vmem:[%s11] sm:$0xf]
        %v1290 = vld [vmem:[%s11 + $0x4] sm:$0xf]
        %v1291 = vld [vmem:[%s11 + $0x8] sm:$0xf]
        %v1292 = vld [vmem:[%s11 + $0xc] sm:$0xf]
        %v1293 = vld [vmem:[%s11 + $0x10] sm:$0xf]
        %v1294 = vld [vmem:[%s11 + $0x14] sm:$0xf]
        %v1295 = vld [vmem:[%s11 + $0x18] sm:$0xf]
        %v1296 = vld [vmem:[%s11 + $0x1c] sm:$0xf]
        %v1297 = vld [vmem:[%s11 + $0x20] sm:$0xf]
        %v1298 = vld [vmem:[%s11 + $0x24] sm:$0xf]
        %v1299 = vld [vmem:[%s11 + $0x28] sm:$0xf]
        %v1300 = vld [vmem:[%s11 + $0x2c] sm:$0xf]
        %v1301 = vld [vmem:[%s11 + $0x30] sm:$0xf]
        %v1302 = vld [vmem:[%s11 + $0x34] sm:$0xf]
        %v1303 = vld [vmem:[%s11 + $0x38] sm:$0xf]
        %v1304 = vld [vmem:[%s11 + $0x3c] sm:$0xf]
        %v1305 = vld [vmem:[%s12] sm:$0x1]
        %v1307 = vlaneseq
        %v1308 = vshrl.u32 %v1307, 7
        %v1309 = vsub.s32 0, %v1308
        %v1310 = vrot.slane %v1305, %v1309
        %v1328 = vunpack.c.l.b16 %v1289
        %v1329 = vunpack.c.l.b16 %v1290
        %v1330 = vunpack.c.l.b16 %v1291
        %v1331 = vunpack.c.l.b16 %v1292
        %v1332 = vunpack.c.l.b16 %v1293
        %v1333 = vunpack.c.l.b16 %v1294
        %v1334 = vunpack.c.l.b16 %v1295
        %v1335 = vunpack.c.l.b16 %v1296
        %v1336 = vunpack.c.l.b16 %v1297
        %v1337 = vunpack.c.l.b16 %v1298
        %v1338 = vunpack.c.l.b16 %v1299
        %v1339 = vunpack.c.l.b16 %v1300
        %v1340 = vunpack.c.l.b16 %v1301
        %v1341 = vunpack.c.l.b16 %v1302
        %v1342 = vunpack.c.l.b16 %v1303
        %v1343 = vunpack.c.l.b16 %v1304
        %v1344 = vpack.c.b16 %v1329, %v1328
        %v1345 = vpack.c.b16 %v1331, %v1330
        %v1346 = vpack.c.b16 %v1333, %v1332
        %v1347 = vpack.c.b16 %v1335, %v1334
        %v1348 = vpack.c.b16 %v1337, %v1336
        %v1349 = vpack.c.b16 %v1339, %v1338
        %v1350 = vpack.c.b16 %v1341, %v1340
        %v1351 = vpack.c.b16 %v1343, %v1342
        %1360 = vmatprep.subr.bf16.mxu0 0
        %1361 = vmatpush1.bf16.msra.mxu0 %v1344
        %1362 = vmatprep.subr.bf16.mxu0 0
        %1363 = vmatpush1.bf16.msra.mxu0 %v1345
        %1364 = vmatprep.subr.bf16.mxu0 0
        %1365 = vmatpush1.bf16.msra.mxu0 %v1346
        %1366 = vmatprep.subr.bf16.mxu0 0
        %1367 = vmatpush1.bf16.msra.mxu0 %v1347
        %1368 = vmatprep.subr.bf16.mxu0 0
        %1369 = vmatpush1.bf16.msra.mxu0 %v1348
        %1370 = vmatprep.subr.bf16.mxu0 0
        %1371 = vmatpush1.bf16.msra.mxu0 %v1349
        %1372 = vmatprep.subr.bf16.mxu0 0
        %1373 = vmatpush1.bf16.msra.mxu0 %v1350
        %1374 = vmatprep.subr.bf16.mxu0 0
        %1375 = vmatpush1.bf16.msra.mxu0 %v1351
        %1376 = vmatprep.subr.bf16.mxu0 0
        %1377 = vmatpush1.bf16.msra.mxu0 0
        %1378 = vmatprep.subr.bf16.mxu0 0
        %1379 = vmatpush1.bf16.msra.mxu0 0
        %1380 = vmatprep.subr.bf16.mxu0 0
        %1381 = vmatpush1.bf16.msra.mxu0 0
        %1382 = vmatprep.subr.bf16.mxu0 0
        %1383 = vmatpush1.bf16.msra.mxu0 0
        %1384 = vmatprep.subr.bf16.mxu0 0
        %1385 = vmatpush1.bf16.msra.mxu0 0
        %1386 = vmatprep.subr.bf16.mxu0 0
        %1387 = vmatpush1.bf16.msra.mxu0 0
        %1388 = vmatprep.subr.bf16.mxu0 0
        %1389 = vmatpush1.bf16.msra.mxu0 0
        %1390 = vmatprep.subr.bf16.mxu0 0
        %1391 = vmatpush1.bf16.msra.mxu0 0
        %1392 = vmatprep.mubr.bf16.mxu0 0
        %1393 = vmatmul.mubr.bf16.gmra.mrb[0].mxu0 %v1288
        %v1394 = vpop.f32.mrb[0].mxu0
        %v1395 = vadd.f32 %v1310, %v1394
        %v1396 = vpop.f32.mrb[0].mxu0
        %v1397 = vpop.f32.mrb[0].mxu0
        %v1398 = vpop.f32.mrb[0].mxu0
        %1399 = vdwg.mxu0
        %v1400 = vadd.f32 %v1182, %v1395
        %1401 = vst.msk [vmem:[%s453] sm:$0xff] %vm466, %v1400
        %s1402 = sand.u32 %s329, 1
        %s1403 = scalar_lea.sflag [#allocation5], %s1402
        %s1404 = sand.u32 %s329, 1
        %s1405 = smul.addr %s1404, 8
        %s1406 = scalar_lea.vmem [#allocation4], %s1405
        // Predicated region
        $region80: #{tpu_custom_call.1} parent=71 // pred_check
          %p1407 = pneg %p339
        $region81: #{tpu_custom_call.1} parent=71 // pred_check_branch
          %1409 = sbr.rel (%p1407) target = $region83
        $region82: #{tpu_custom_call.1} parent=71 // pred_region
          %s1411 = ssub.s32 128, 128
          %1412 = vsyncadd %s1403, %s1411
          %s1413 = sadd.s32 %s32, %s31
          %s1414 = smul.addr %s1413, 128
          %s1415 = scalar_lea.hbm %s13, %s1414
          %s1417 = sshll.u32 %s1406, 4
          %s1418 = int_to_ptr.vmem [resolvable:$true] %s1417
          %1420 = dma.vmem_to_hbm [thread:$0]  %s1418, 128, %s1415, %s1403
        $region83: #{tpu_custom_call.1} parent=71 // pred_fallthru
          _
      $region72: #{tpu_custom_call.1} parent=5 // pred_fallthru
        _
      %p1421 = scmp.le.s32.totalorder 2, %s22
      // Predicated region
      $region84: #{tpu_custom_call.1} parent=5 // pred_check
        %p1422 = pneg %p1421
      $region85: #{tpu_custom_call.1} parent=5 // pred_check_branch
        %1424 = sbr.rel (%p1422) target = $region87
      $region86: #{tpu_custom_call.1} parent=5 // pred_region
        %s1425 = ssub.s32 %s22, 2
        // Predicated region
        $region88: #{tpu_custom_call.1} parent=86 // pred_check
          %p1426 = pneg %p345
        $region89: #{tpu_custom_call.1} parent=86 // pred_check_branch
          %1428 = sbr.rel (%p1426) target = $region91
        $region90: #{tpu_custom_call.1} parent=86 // pred_region
          %s1429 = sand.u32 %s330, 1
          %s1430 = scalar_lea.sflag [#allocation5], %s1429
          %s1431 = sand.u32 %s330, 1
          %s1432 = smul.addr %s1431, 8
          %s1433 = scalar_lea.vmem [#allocation4], %s1432
          %1434 = dma.done %s1430, 128
        $region91: #{tpu_custom_call.1} parent=86 // pred_fallthru
          _
      $region87: #{tpu_custom_call.1} parent=5 // pred_fallthru
        _
    $region6: #{tpu_custom_call.1} parent=1 // loop_footer
      %s26 = sadd.s32 1, %s22
    $region7: #{tpu_custom_call.1} parent=1 // loop_footer_branch
      %21 = sbr.rel target = $region3
    $region8: #{tpu_custom_call.1} parent=1 // loop_exit
      _
    %1435 = vsyncpa [#allocation5], 1
    %s1436 = scalar_lea.sflag [#allocation5], 1
    %1437 = vsyncpa %s1436, 1

</llo_original>
